<compile_context>
chip_gen: v6e
topology: v6e:2x2x1
jax: 0.10.0
libtpu: 0.0.40
codegen_flags: <defaults>
</compile_context>

<pallas_src>
import jax
import jax.numpy as jnp
from jax import lax
from jax.experimental import pallas as pl
from jax.experimental.pallas import tpu as pltpu

# Synthetic Vicuna-shaped config, sized so every kernel's last dim is a
# multiple of the 128-lane vreg width.
B, S, D, H, HD, F, V, L = 2, 8, 128, 4, 32, 256, 256, 2
EPS = 1e-6
TN = 128          # lm_head vocab tile width (grid axis)


# ------------------------- in-kernel helpers -------------------------

def _rmsnorm(x, w):
    """f32 RMSNorm. x: (S, D) f32, w: (1, D) f32."""
    var = jnp.mean(x * x, axis=-1, keepdims=True)
    return x * lax.rsqrt(var + EPS) * w


# ------------------- fused decoder stack (all layers) -------------------

def _stack_kernel(h_in_ref, ln1_ref, wqkv_ref, rot_ref, cos_ref, sin_ref,
                  wo_ref, ln2_ref, wgu_ref, wd_ref,
                  h_out_ref, k_out_ref, v_out_ref,
                  h_scr):
    """Grid point (b, l): applies decoder layer l to batch element b.

    The running hidden state is carried in VMEM scratch across the layer
    ("arbitrary") grid axis: loaded from HBM embeddings only at l == 0 and
    written back to HBM only via the resident output buffer.  Per-layer
    weights arrive as (1, ...) blocks of the stacked (L, ...) weight arrays.
    """
    l = pl.program_id(1)

    @pl.when(l == 0)
    def _():
        h_scr[...] = h_in_ref[0]                              # (S, D) f32

    h = h_scr[...]

    # ---- pre-attention RMSNorm + fused QKV projection ----
    x = _rmsnorm(h, ln1_ref[0])
    qkv = jnp.dot(x.astype(jnp.bfloat16), wqkv_ref[0],
                  preferred_element_type=jnp.float32)          # (S, 3D)
    q, k, v = qkv[:, :D], qkv[:, D:2 * D], qkv[:, 2 * D:]

    # ---- RoPE: x*cos + rotate_half(x)*sin  (rotate_half == x @ R) ----
    cos, sin = cos_ref[...], sin_ref[...]
    rot = rot_ref[...]
    q = q * cos + jnp.dot(q.astype(jnp.bfloat16), rot,
                          preferred_element_type=jnp.float32) * sin
    k = k * cos + jnp.dot(k.astype(jnp.bfloat16), rot,
                          preferred_element_type=jnp.float32) * sin
    k_out_ref[0, 0] = k                                        # presents (KV)
    v_out_ref[0, 0] = v

    # ---- causal softmax attention, heads unrolled (H is static) ----
    row = lax.broadcasted_iota(jnp.int32, (S, S), 0)
    col = lax.broadcasted_iota(jnp.int32, (S, S), 1)
    causal = col <= row
    scale = jnp.float32(1.0 / (HD ** 0.5))
    qb = q.astype(jnp.bfloat16)
    kb = k.astype(jnp.bfloat16)
    vb = v.astype(jnp.bfloat16)
    heads = []
    for hh in range(H):
        lo, hi = hh * HD, (hh + 1) * HD
        s = lax.dot_general(qb[:, lo:hi], kb[:, lo:hi],
                            (((1,), (1,)), ((), ())),          # q @ k.T
                            preferred_element_type=jnp.float32) * scale
        s = jnp.where(causal, s, jnp.float32(-1e30))           # causal mask (f32)
        m = jnp.max(s, axis=-1, keepdims=True)
        p = jnp.exp(s - m)
        inv = pl.reciprocal(jnp.sum(p, axis=-1, keepdims=True), approx=True)
        o = jnp.dot(p.astype(jnp.bfloat16), vb[:, lo:hi],
                    preferred_element_type=jnp.float32)
        heads.append(o * inv)
    attn = jnp.concatenate(heads, axis=-1)                     # (S, D)

    # ---- output projection + residual ----
    h = h + jnp.dot(attn.astype(jnp.bfloat16), wo_ref[0],
                    preferred_element_type=jnp.float32)

    # ---- post-attention RMSNorm + fused SwiGLU MLP + residual ----
    x = _rmsnorm(h, ln2_ref[0])
    gu = jnp.dot(x.astype(jnp.bfloat16), wgu_ref[0],
                 preferred_element_type=jnp.float32)           # (S, 2F)
    g, u = gu[:, :F], gu[:, F:]
    inner = (g * jax.nn.sigmoid(g)) * u                        # SiLU(gate)*up, f32
    h_new = h + jnp.dot(inner.astype(jnp.bfloat16), wd_ref[0],
                        preferred_element_type=jnp.float32)

    h_scr[...] = h_new          # carry to next layer
    h_out_ref[0] = h_new        # resident output block; last layer's write survives


def decoder_stack(h, stacked, rot, cos, sin):
    """h: (B, S, D) f32 -> (h_out (B,S,D), k (L,B,S,D), v (L,B,S,D)) f32."""
    Bc = h.shape[0]
    Lc = stacked["wqkv"].shape[0]

    def shared(a):
        nd = a.ndim
        return pl.BlockSpec(a.shape, lambda b, l, _nd=nd: (0,) * _nd)

    def per_layer(a):
        nd = a.ndim
        return pl.BlockSpec((1,) + a.shape[1:],
                            lambda b, l, _nd=nd: (l,) + (0,) * (_nd - 1))

    act_in = pl.BlockSpec((1, S, D), lambda b, l: (b, 0, 0))
    act_out = pl.BlockSpec((1, S, D), lambda b, l: (b, 0, 0))
    kv_out = pl.BlockSpec((1, 1, S, D), lambda b, l: (l, b, 0, 0))

    h_sds = jax.ShapeDtypeStruct((Bc, S, D), jnp.float32)
    kv_sds = jax.ShapeDtypeStruct((Lc, Bc, S, D), jnp.float32)

    return pl.pallas_call(
        _stack_kernel,
        out_shape=(h_sds, kv_sds, kv_sds),
        grid=(Bc, Lc),
        in_specs=[act_in,
                  per_layer(stacked["ln1"]), per_layer(stacked["wqkv"]),
                  shared(rot), shared(cos), shared(sin),
                  per_layer(stacked["wo"]), per_layer(stacked["ln2"]),
                  per_layer(stacked["wgu"]), per_layer(stacked["wd"])],
        out_specs=(act_out, kv_out, kv_out),
        scratch_shapes=[pltpu.VMEM((S, D), jnp.float32)],
        compiler_params=pltpu.CompilerParams(
            dimension_semantics=("parallel", "arbitrary")),
    )(h, stacked["ln1"], stacked["wqkv"], rot, cos, sin,
      stacked["wo"], stacked["ln2"], stacked["wgu"], stacked["wd"])


# ------------------------- fused final norm + lm_head -------------------------

def _lm_head_kernel(x_ref, nw_ref, w_ref, o_ref):
    xn = _rmsnorm(x_ref[...], nw_ref[...])
    o_ref[...] = jnp.dot(xn.astype(jnp.bfloat16), w_ref[...],
                         preferred_element_type=jnp.float32)


def lm_head(x, norm_w, w):
    """final RMSNorm + vocab projection, tiled over the vocab axis."""
    # TODO(synk): at real Vicuna sizes (D=4096, V=32000) additionally tile the
    # K (=D) axis with an f32 VMEM accumulator + pl.when init/finalize; at
    # D=128 a single K block is already resident.
    M, Dm = x.shape
    Vm = w.shape[1]
    return pl.pallas_call(
        _lm_head_kernel,
        out_shape=jax.ShapeDtypeStruct((M, Vm), jnp.float32),
        grid=(Vm // TN,),
        in_specs=[pl.BlockSpec((M, Dm), lambda j: (0, 0)),
                  pl.BlockSpec((1, Dm), lambda j: (0, 0)),
                  pl.BlockSpec((Dm, TN), lambda j: (0, j))],
        out_specs=pl.BlockSpec((M, TN), lambda j: (0, j)),
        compiler_params=pltpu.CompilerParams(
            dimension_semantics=("parallel",)),
    )(x, norm_w, w)


# ------------------------- params / tables -------------------------

def rope_tables():
    inv_freq = 1.0 / (10000.0 ** (jnp.arange(0, HD, 2, dtype=jnp.float32) / HD))
    t = jnp.arange(S, dtype=jnp.float32)
    freqs = jnp.outer(t, inv_freq)                       # (S, HD//2)
    emb = jnp.concatenate([freqs, freqs], axis=-1)       # (S, HD)
    cos = jnp.tile(jnp.cos(emb), (1, H))                 # (S, D) per-head tiled
    sin = jnp.tile(jnp.sin(emb), (1, H))
    return cos, sin


def rotate_half_matrix():
    """R (D, D) such that x @ R == concat([-x2, x1]) inside every HD chunk."""
    half = HD // 2
    idx = jnp.arange(half)
    r = jnp.zeros((HD, HD), jnp.float32)
    r = r.at[idx + half, idx].set(-1.0)     # out[:half] = -x[half:]
    r = r.at[idx, idx + half].set(1.0)      # out[half:] =  x[:half]
    return jnp.kron(jnp.eye(H, dtype=jnp.float32), r)    # block-diagonal


def init_params(key):
    std = 0.02
    keys = jax.random.split(key, 2 + 4 * L)
    cos, sin = rope_tables()
    params = {
        "embed": jax.random.normal(keys[0], (V, D), jnp.float32) * std,
        "final_norm": jnp.ones((1, D), jnp.float32),
        "lm_head": (jax.random.normal(keys[1], (D, V), jnp.float32)
                    * std).astype(jnp.bfloat16),
        "rot": rotate_half_matrix().astype(jnp.bfloat16),
        "cos": cos, "sin": sin,
    }
    wqkv, wo, wgu, wd = [], [], [], []
    for l in range(L):
        k = keys[2 + 4 * l: 2 + 4 * (l + 1)]
        wqkv.append((jax.random.normal(k[0], (D, 3 * D), jnp.float32)
                     * std).astype(jnp.bfloat16))        # wq|wk|wv concatenated
        wo.append((jax.random.normal(k[1], (D, D), jnp.float32)
                   * std).astype(jnp.bfloat16))
        wgu.append((jax.random.normal(k[2], (D, 2 * F), jnp.float32)
                    * std).astype(jnp.bfloat16))         # wg|wu concatenated
        wd.append((jax.random.normal(k[3], (F, D), jnp.float32)
                   * std).astype(jnp.bfloat16))
    params["stacked"] = {
        "ln1": jnp.ones((L, 1, D), jnp.float32),
        "ln2": jnp.ones((L, 1, D), jnp.float32),
        "wqkv": jnp.stack(wqkv),                         # (L, D, 3D) bf16
        "wo": jnp.stack(wo),                             # (L, D, D)  bf16
        "wgu": jnp.stack(wgu),                           # (L, D, 2F) bf16
        "wd": jnp.stack(wd),                             # (L, F, D)  bf16
    }
    return params


# ------------------------- forward (JAX glue) -------------------------

def sharded_vicuna_forward(params, input_ids, is_first=True,
                           past_key_values=None, attention_mask=None):
    # TODO(synk): decode path (past_key_values append) and explicit padding
    # attention_mask are not implemented; this mirrors is_first=True prefill
    # with the implicit causal mask (use_cache=True -> presents returned).
    Bc, Sc = input_ids.shape
    h = jnp.take(params["embed"], input_ids, axis=0)     # (B, S, D) gather (glue)
    h, ks, vs = decoder_stack(h, params["stacked"], params["rot"],
                              params["cos"], params["sin"])
    presents = tuple(
        (ks[l].reshape(Bc, Sc, H, HD).transpose(0, 2, 1, 3),
         vs[l].reshape(Bc, Sc, H, HD).transpose(0, 2, 1, 3))
        for l in range(L))
    logits = lm_head(h.reshape(Bc * Sc, D), params["final_norm"],
                     params["lm_head"])
    # use_cache=True -> (logits, past_key_values); output_attentions=False
    return logits.reshape(Bc, Sc, V), presents


if __name__ == "__main__":
    key = jax.random.PRNGKey(0)
    pkey, ikey = jax.random.split(key)
    params = init_params(pkey)
    input_ids = jax.random.randint(ikey, (B, S), 0, V, dtype=jnp.int32)
    logits, presents = sharded_vicuna_forward(params, input_ids, is_first=True)
    logits = jax.block_until_ready(logits)
    assert logits.shape == (B, S, V) and logits.dtype == jnp.float32
    assert bool(jnp.all(jnp.isfinite(logits)))
    assert len(presents) == L and presents[0][0].shape == (B, H, S, HD)
    assert bool(jnp.all(jnp.isfinite(presents[0][0])))
    print("KERNEL_OK")
</pallas_src>

<mosaic_0001>
module attributes {stable_mosaic.version = 11 : i64} {
  func.func @_stack_kernel(%arg0: i32, %arg1: i32, %arg2: memref<1x8x128xf32, #tpu.memory_space<vmem>>, %arg3: memref<1x1x128xf32, #tpu.memory_space<vmem>>, %arg4: memref<1x128x384xbf16, #tpu.memory_space<vmem>>, %arg5: memref<128x128xbf16, #tpu.memory_space<vmem>>, %arg6: memref<8x128xf32, #tpu.memory_space<vmem>>, %arg7: memref<8x128xf32, #tpu.memory_space<vmem>>, %arg8: memref<1x128x128xbf16, #tpu.memory_space<vmem>>, %arg9: memref<1x1x128xf32, #tpu.memory_space<vmem>>, %arg10: memref<1x128x512xbf16, #tpu.memory_space<vmem>>, %arg11: memref<1x256x128xbf16, #tpu.memory_space<vmem>>, %arg12: memref<1x8x128xf32, #tpu.memory_space<vmem>>, %arg13: memref<1x1x8x128xf32, #tpu.memory_space<vmem>>, %arg14: memref<1x1x8x128xf32, #tpu.memory_space<vmem>>, %arg15: memref<8x128xf32, #tpu.memory_space<vmem>>) attributes {dimension_semantics = [#tpu.dimension_semantics<parallel>, #tpu.dimension_semantics<arbitrary>], iteration_bounds = array<i64: 2, 2>, scalar_prefetch = 0 : i64, scratch_operands = 1 : i64, tpu.core_type = #tpu.core_type<tc>, window_params = [{transform_indices = @transform_0, window_bounds = array<i64: 1, 8, 128>}, {transform_indices = @transform_1, window_bounds = array<i64: 1, 1, 128>}, {transform_indices = @transform_2, window_bounds = array<i64: 1, 128, 384>}, {pipeline_mode = #tpu.pipeline_mode<synchronous>, transform_indices = @transform_3, window_bounds = array<i64: 128, 128>}, {pipeline_mode = #tpu.pipeline_mode<synchronous>, transform_indices = @transform_4, window_bounds = array<i64: 8, 128>}, {pipeline_mode = #tpu.pipeline_mode<synchronous>, transform_indices = @transform_5, window_bounds = array<i64: 8, 128>}, {transform_indices = @transform_6, window_bounds = array<i64: 1, 128, 128>}, {transform_indices = @transform_7, window_bounds = array<i64: 1, 1, 128>}, {transform_indices = @transform_8, window_bounds = array<i64: 1, 128, 512>}, {transform_indices = @transform_9, window_bounds = array<i64: 1, 256, 128>}, {transform_indices = @transform_10, window_bounds = array<i64: 1, 8, 128>}, {transform_indices = @transform_11, window_bounds = array<i64: 1, 1, 8, 128>}, {transform_indices = @transform_12, window_bounds = array<i64: 1, 1, 8, 128>}]} {
    %c0_i32 = arith.constant 0 : i32
    %0 = arith.cmpi eq, %arg1, %c0_i32 : i32
    %1 = arith.extui %0 : i1 to i32
    %c0_i32_0 = arith.constant 0 : i32
    %2 = arith.cmpi ne, %1, %c0_i32_0 : i32
    scf.if %2 {
      %c0_75 = arith.constant 0 : index
      %c0_76 = arith.constant 0 : index
      %c0_77 = arith.constant 0 : index
      %172 = vector.load %arg2[%c0_75, %c0_76, %c0_77] : memref<1x8x128xf32, #tpu.memory_space<vmem>>, vector<1x8x128xf32>
      %173 = vector.shape_cast %172 : vector<1x8x128xf32> to vector<8x128xf32>
      %c0_78 = arith.constant 0 : index
      %c0_79 = arith.constant 0 : index
      %174 = vector.load %arg15[%c0_78, %c0_79] : memref<8x128xf32, #tpu.memory_space<vmem>>, vector<8x128xf32>
      tpu.vector_store %arg15[%c0_78, %c0_79], %173 {strides = array<i32>} : memref<8x128xf32, #tpu.memory_space<vmem>>, vector<8x128xf32>,
    } else {
    }
    %c0 = arith.constant 0 : index
    %c0_1 = arith.constant 0 : index
    %3 = vector.load %arg15[%c0, %c0_1] : memref<8x128xf32, #tpu.memory_space<vmem>>, vector<8x128xf32>
    %c0_2 = arith.constant 0 : index
    %c0_3 = arith.constant 0 : index
    %c0_4 = arith.constant 0 : index
    %4 = vector.load %arg3[%c0_2, %c0_3, %c0_4] : memref<1x1x128xf32, #tpu.memory_space<vmem>>, vector<1x1x128xf32>
    %5 = vector.shape_cast %4 : vector<1x1x128xf32> to vector<1x128xf32>
    %6 = arith.mulf %3, %3 : vector<8x128xf32>
    %cst = arith.constant dense<0.000000e+00> : vector<8xf32>
    %7 = vector.multi_reduction <add>, %6, %cst [1] : vector<8x128xf32> to vector<8xf32>
    %8 = vector.shape_cast %7 : vector<8xf32> to vector<8x1xf32>
    %cst_5 = arith.constant 1.280000e+02 : f32
    %9 = vector.broadcast %cst_5 : f32 to vector<8x1xf32>
    %10 = arith.divf %8, %9 : vector<8x1xf32>
    %cst_6 = arith.constant 9.99999997E-7 : f32
    %11 = vector.broadcast %cst_6 : f32 to vector<8x1xf32>
    %12 = arith.addf %10, %11 : vector<8x1xf32>
    %13 = math.rsqrt %12 : vector<8x1xf32>
    %14 = vector.broadcast %13 : vector<8x1xf32> to vector<8x128xf32>
    %15 = arith.mulf %3, %14 : vector<8x128xf32>
    %16 = vector.broadcast %5 : vector<1x128xf32> to vector<8x128xf32>
    %17 = arith.mulf %15, %16 : vector<8x128xf32>
    %18 = arith.truncf %17 : vector<8x128xf32> to vector<8x128xbf16>
    %c0_7 = arith.constant 0 : index
    %c0_8 = arith.constant 0 : index
    %c0_9 = arith.constant 0 : index
    %19 = vector.load %arg4[%c0_7, %c0_8, %c0_9] : memref<1x128x384xbf16, #tpu.memory_space<vmem>>, vector<1x128x384xbf16>
    %20 = vector.shape_cast %19 : vector<1x128x384xbf16> to vector<128x384xbf16>
    %cst_10 = arith.constant dense<0.000000e+00> : vector<8x384xf32>
    %21 = tpu.matmul %18, %20, %cst_10 {dimension_numbers = #tpu.dot_dimension_numbers<[1], [0], [0], [1], [0, 0, 1, 1], [], []>} : vector<8x128xbf16>, vector<128x384xbf16>, vector<8x384xf32> -> vector<8x384xf32>
    %22 = vector.extract_strided_slice %21 {offsets = [0, 0], sizes = [8, 128], strides = [1, 1]} : vector<8x384xf32> to vector<8x128xf32>
    %23 = vector.extract_strided_slice %21 {offsets = [0, 128], sizes = [8, 128], strides = [1, 1]} : vector<8x384xf32> to vector<8x128xf32>
    %24 = vector.extract_strided_slice %21 {offsets = [0, 256], sizes = [8, 128], strides = [1, 1]} : vector<8x384xf32> to vector<8x128xf32>
    %c0_11 = arith.constant 0 : index
    %c0_12 = arith.constant 0 : index
    %25 = vector.load %arg6[%c0_11, %c0_12] : memref<8x128xf32, #tpu.memory_space<vmem>>, vector<8x128xf32>
    %c0_13 = arith.constant 0 : index
    %c0_14 = arith.constant 0 : index
    %26 = vector.load %arg7[%c0_13, %c0_14] : memref<8x128xf32, #tpu.memory_space<vmem>>, vector<8x128xf32>
    %c0_15 = arith.constant 0 : index
    %c0_16 = arith.constant 0 : index
    %27 = vector.load %arg5[%c0_15, %c0_16] : memref<128x128xbf16, #tpu.memory_space<vmem>>, vector<128x128xbf16>
    %28 = arith.mulf %22, %25 : vector<8x128xf32>
    %29 = arith.truncf %22 : vector<8x128xf32> to vector<8x128xbf16>
    %cst_17 = arith.constant dense<0.000000e+00> : vector<8x128xf32>
    %30 = tpu.matmul %29, %27, %cst_17 {dimension_numbers = #tpu.dot_dimension_numbers<[1], [0], [0], [1], [0, 0, 1, 1], [], []>} : vector<8x128xbf16>, vector<128x128xbf16>, vector<8x128xf32> -> vector<8x128xf32>
    %31 = arith.mulf %30, %26 : vector<8x128xf32>
    %32 = arith.addf %28, %31 : vector<8x128xf32>
    %33 = arith.mulf %23, %25 : vector<8x128xf32>
    %34 = arith.truncf %23 : vector<8x128xf32> to vector<8x128xbf16>
    %cst_18 = arith.constant dense<0.000000e+00> : vector<8x128xf32>
    %35 = tpu.matmul %34, %27, %cst_18 {dimension_numbers = #tpu.dot_dimension_numbers<[1], [0], [0], [1], [0, 0, 1, 1], [], []>} : vector<8x128xbf16>, vector<128x128xbf16>, vector<8x128xf32> -> vector<8x128xf32>
    %36 = arith.mulf %35, %26 : vector<8x128xf32>
    %37 = arith.addf %33, %36 : vector<8x128xf32>
    %c0_19 = arith.constant 0 : index
    %c0_20 = arith.constant 0 : index
    %c0_21 = arith.constant 0 : index
    %c0_22 = arith.constant 0 : index
    %38 = vector.load %arg13[%c0_19, %c0_20, %c0_21, %c0_22] : memref<1x1x8x128xf32, #tpu.memory_space<vmem>>, vector<1x1x8x128xf32>
    %39 = vector.shape_cast %38 : vector<1x1x8x128xf32> to vector<8x128xf32>
    %40 = vector.shape_cast %37 : vector<8x128xf32> to vector<1x1x8x128xf32>
    tpu.vector_store %arg13[%c0_19, %c0_20, %c0_21, %c0_22], %40 {strides = array<i32>} : memref<1x1x8x128xf32, #tpu.memory_space<vmem>>, vector<1x1x8x128xf32>,
    %c0_23 = arith.constant 0 : index
    %c0_24 = arith.constant 0 : index
    %c0_25 = arith.constant 0 : index
    %c0_26 = arith.constant 0 : index
    %41 = vector.load %arg14[%c0_23, %c0_24, %c0_25, %c0_26] : memref<1x1x8x128xf32, #tpu.memory_space<vmem>>, vector<1x1x8x128xf32>
    %42 = vector.shape_cast %41 : vector<1x1x8x128xf32> to vector<8x128xf32>
    %43 = vector.shape_cast %24 : vector<8x128xf32> to vector<1x1x8x128xf32>
    tpu.vector_store %arg14[%c0_23, %c0_24, %c0_25, %c0_26], %43 {strides = array<i32>} : memref<1x1x8x128xf32, #tpu.memory_space<vmem>>, vector<1x1x8x128xf32>,
    %44 = tpu.iota {dimensions = array<i32: 0>} : vector<8x8xi32>
    %45 = tpu.iota {dimensions = array<i32: 1>} : vector<8x8xi32>
    %46 = arith.cmpi sle, %45, %44 : vector<8x8xi32>
    %47 = arith.truncf %32 : vector<8x128xf32> to vector<8x128xbf16>
    %48 = arith.truncf %37 : vector<8x128xf32> to vector<8x128xbf16>
    %49 = arith.truncf %24 : vector<8x128xf32> to vector<8x128xbf16>
    %50 = vector.extract_strided_slice %47 {offsets = [0, 0], sizes = [8, 32], strides = [1, 1]} : vector<8x128xbf16> to vector<8x32xbf16>
    %51 = vector.extract_strided_slice %48 {offsets = [0, 0], sizes = [8, 32], strides = [1, 1]} : vector<8x128xbf16> to vector<8x32xbf16>
    %cst_27 = arith.constant dense<0.000000e+00> : vector<8x8xf32>
    %52 = tpu.matmul %50, %51, %cst_27 {dimension_numbers = #tpu.dot_dimension_numbers<[1], [1], [0], [0], [0, 0, 1, 0], [], []>} : vector<8x32xbf16>, vector<8x32xbf16>, vector<8x8xf32> -> vector<8x8xf32>
    %cst_28 = arith.constant 0.176776692 : f32
    %53 = vector.broadcast %cst_28 : f32 to vector<8x8xf32>
    %54 = arith.mulf %52, %53 : vector<8x8xf32>
    %cst_29 = arith.constant -1.000000e+30 : f32
    %55 = vector.broadcast %cst_29 : f32 to vector<8x8xf32>
    %56 = arith.select %46, %54, %55 : vector<8x8xi1>, vector<8x8xf32>
    %cst_30 = arith.constant dense<0xFF800000> : vector<8xf32>
    %57 = vector.multi_reduction <maximumf>, %56, %cst_30 [1] : vector<8x8xf32> to vector<8xf32>
    %58 = vector.shape_cast %57 : vector<8xf32> to vector<8x1xf32>
    %59 = vector.broadcast %58 : vector<8x1xf32> to vector<8x8xf32>
    %60 = arith.subf %56, %59 : vector<8x8xf32>
    %61 = math.exp %60 : vector<8x8xf32>
    %cst_31 = arith.constant dense<0.000000e+00> : vector<8xf32>
    %62 = vector.multi_reduction <add>, %61, %cst_31 [1] : vector<8x8xf32> to vector<8xf32>
    %63 = vector.shape_cast %62 : vector<8xf32> to vector<8x1xf32>
    %64 = tpu.reciprocal %63 {approx = true} : vector<8x1xf32> -> vector<8x1xf32>
    %65 = arith.truncf %61 : vector<8x8xf32> to vector<8x8xbf16>
    %66 = vector.extract_strided_slice %49 {offsets = [0, 0], sizes = [8, 32], strides = [1, 1]} : vector<8x128xbf16> to vector<8x32xbf16>
    %cst_32 = arith.constant dense<0.000000e+00> : vector<8x32xf32>
    %67 = tpu.matmul %65, %66, %cst_32 {dimension_numbers = #tpu.dot_dimension_numbers<[1], [0], [0], [1], [0, 0, 1, 1], [], []>} : vector<8x8xbf16>, vector<8x32xbf16>, vector<8x32xf32> -> vector<8x32xf32>
    %68 = vector.broadcast %64 : vector<8x1xf32> to vector<8x32xf32>
    %69 = arith.mulf %67, %68 : vector<8x32xf32>
    %70 = vector.extract_strided_slice %47 {offsets = [0, 32], sizes = [8, 32], strides = [1, 1]} : vector<8x128xbf16> to vector<8x32xbf16>
    %71 = vector.extract_strided_slice %48 {offsets = [0, 32], sizes = [8, 32], strides = [1, 1]} : vector<8x128xbf16> to vector<8x32xbf16>
    %cst_33 = arith.constant dense<0.000000e+00> : vector<8x8xf32>
    %72 = tpu.matmul %70, %71, %cst_33 {dimension_numbers = #tpu.dot_dimension_numbers<[1], [1], [0], [0], [0, 0, 1, 0], [], []>} : vector<8x32xbf16>, vector<8x32xbf16>, vector<8x8xf32> -> vector<8x8xf32>
    %cst_34 = arith.constant 0.176776692 : f32
    %73 = vector.broadcast %cst_34 : f32 to vector<8x8xf32>
    %74 = arith.mulf %72, %73 : vector<8x8xf32>
    %cst_35 = arith.constant -1.000000e+30 : f32
    %75 = vector.broadcast %cst_35 : f32 to vector<8x8xf32>
    %76 = arith.select %46, %74, %75 : vector<8x8xi1>, vector<8x8xf32>
    %cst_36 = arith.constant dense<0xFF800000> : vector<8xf32>
    %77 = vector.multi_reduction <maximumf>, %76, %cst_36 [1] : vector<8x8xf32> to vector<8xf32>
    %78 = vector.shape_cast %77 : vector<8xf32> to vector<8x1xf32>
    %79 = vector.broadcast %78 : vector<8x1xf32> to vector<8x8xf32>
    %80 = arith.subf %76, %79 : vector<8x8xf32>
    %81 = math.exp %80 : vector<8x8xf32>
    %cst_37 = arith.constant dense<0.000000e+00> : vector<8xf32>
    %82 = vector.multi_reduction <add>, %81, %cst_37 [1] : vector<8x8xf32> to vector<8xf32>
    %83 = vector.shape_cast %82 : vector<8xf32> to vector<8x1xf32>
    %84 = tpu.reciprocal %83 {approx = true} : vector<8x1xf32> -> vector<8x1xf32>
    %85 = arith.truncf %81 : vector<8x8xf32> to vector<8x8xbf16>
    %86 = vector.extract_strided_slice %49 {offsets = [0, 32], sizes = [8, 32], strides = [1, 1]} : vector<8x128xbf16> to vector<8x32xbf16>
    %cst_38 = arith.constant dense<0.000000e+00> : vector<8x32xf32>
    %87 = tpu.matmul %85, %86, %cst_38 {dimension_numbers = #tpu.dot_dimension_numbers<[1], [0], [0], [1], [0, 0, 1, 1], [], []>} : vector<8x8xbf16>, vector<8x32xbf16>, vector<8x32xf32> -> vector<8x32xf32>
    %88 = vector.broadcast %84 : vector<8x1xf32> to vector<8x32xf32>
    %89 = arith.mulf %87, %88 : vector<8x32xf32>
    %90 = vector.extract_strided_slice %47 {offsets = [0, 64], sizes = [8, 32], strides = [1, 1]} : vector<8x128xbf16> to vector<8x32xbf16>
    %91 = vector.extract_strided_slice %48 {offsets = [0, 64], sizes = [8, 32], strides = [1, 1]} : vector<8x128xbf16> to vector<8x32xbf16>
    %cst_39 = arith.constant dense<0.000000e+00> : vector<8x8xf32>
    %92 = tpu.matmul %90, %91, %cst_39 {dimension_numbers = #tpu.dot_dimension_numbers<[1], [1], [0], [0], [0, 0, 1, 0], [], []>} : vector<8x32xbf16>, vector<8x32xbf16>, vector<8x8xf32> -> vector<8x8xf32>
    %cst_40 = arith.constant 0.176776692 : f32
    %93 = vector.broadcast %cst_40 : f32 to vector<8x8xf32>
    %94 = arith.mulf %92, %93 : vector<8x8xf32>
    %cst_41 = arith.constant -1.000000e+30 : f32
    %95 = vector.broadcast %cst_41 : f32 to vector<8x8xf32>
    %96 = arith.select %46, %94, %95 : vector<8x8xi1>, vector<8x8xf32>
    %cst_42 = arith.constant dense<0xFF800000> : vector<8xf32>
    %97 = vector.multi_reduction <maximumf>, %96, %cst_42 [1] : vector<8x8xf32> to vector<8xf32>
    %98 = vector.shape_cast %97 : vector<8xf32> to vector<8x1xf32>
    %99 = vector.broadcast %98 : vector<8x1xf32> to vector<8x8xf32>
    %100 = arith.subf %96, %99 : vector<8x8xf32>
    %101 = math.exp %100 : vector<8x8xf32>
    %cst_43 = arith.constant dense<0.000000e+00> : vector<8xf32>
    %102 = vector.multi_reduction <add>, %101, %cst_43 [1] : vector<8x8xf32> to vector<8xf32>
    %103 = vector.shape_cast %102 : vector<8xf32> to vector<8x1xf32>
    %104 = tpu.reciprocal %103 {approx = true} : vector<8x1xf32> -> vector<8x1xf32>
    %105 = arith.truncf %101 : vector<8x8xf32> to vector<8x8xbf16>
    %106 = vector.extract_strided_slice %49 {offsets = [0, 64], sizes = [8, 32], strides = [1, 1]} : vector<8x128xbf16> to vector<8x32xbf16>
    %cst_44 = arith.constant dense<0.000000e+00> : vector<8x32xf32>
    %107 = tpu.matmul %105, %106, %cst_44 {dimension_numbers = #tpu.dot_dimension_numbers<[1], [0], [0], [1], [0, 0, 1, 1], [], []>} : vector<8x8xbf16>, vector<8x32xbf16>, vector<8x32xf32> -> vector<8x32xf32>
    %108 = vector.broadcast %104 : vector<8x1xf32> to vector<8x32xf32>
    %109 = arith.mulf %107, %108 : vector<8x32xf32>
    %110 = vector.extract_strided_slice %47 {offsets = [0, 96], sizes = [8, 32], strides = [1, 1]} : vector<8x128xbf16> to vector<8x32xbf16>
    %111 = vector.extract_strided_slice %48 {offsets = [0, 96], sizes = [8, 32], strides = [1, 1]} : vector<8x128xbf16> to vector<8x32xbf16>
    %cst_45 = arith.constant dense<0.000000e+00> : vector<8x8xf32>
    %112 = tpu.matmul %110, %111, %cst_45 {dimension_numbers = #tpu.dot_dimension_numbers<[1], [1], [0], [0], [0, 0, 1, 0], [], []>} : vector<8x32xbf16>, vector<8x32xbf16>, vector<8x8xf32> -> vector<8x8xf32>
    %cst_46 = arith.constant 0.176776692 : f32
    %113 = vector.broadcast %cst_46 : f32 to vector<8x8xf32>
    %114 = arith.mulf %112, %113 : vector<8x8xf32>
    %cst_47 = arith.constant -1.000000e+30 : f32
    %115 = vector.broadcast %cst_47 : f32 to vector<8x8xf32>
    %116 = arith.select %46, %114, %115 : vector<8x8xi1>, vector<8x8xf32>
    %cst_48 = arith.constant dense<0xFF800000> : vector<8xf32>
    %117 = vector.multi_reduction <maximumf>, %116, %cst_48 [1] : vector<8x8xf32> to vector<8xf32>
    %118 = vector.shape_cast %117 : vector<8xf32> to vector<8x1xf32>
    %119 = vector.broadcast %118 : vector<8x1xf32> to vector<8x8xf32>
    %120 = arith.subf %116, %119 : vector<8x8xf32>
    %121 = math.exp %120 : vector<8x8xf32>
    %cst_49 = arith.constant dense<0.000000e+00> : vector<8xf32>
    %122 = vector.multi_reduction <add>, %121, %cst_49 [1] : vector<8x8xf32> to vector<8xf32>
    %123 = vector.shape_cast %122 : vector<8xf32> to vector<8x1xf32>
    %124 = tpu.reciprocal %123 {approx = true} : vector<8x1xf32> -> vector<8x1xf32>
    %125 = arith.truncf %121 : vector<8x8xf32> to vector<8x8xbf16>
    %126 = vector.extract_strided_slice %49 {offsets = [0, 96], sizes = [8, 32], strides = [1, 1]} : vector<8x128xbf16> to vector<8x32xbf16>
    %cst_50 = arith.constant dense<0.000000e+00> : vector<8x32xf32>
    %127 = tpu.matmul %125, %126, %cst_50 {dimension_numbers = #tpu.dot_dimension_numbers<[1], [0], [0], [1], [0, 0, 1, 1], [], []>} : vector<8x8xbf16>, vector<8x32xbf16>, vector<8x32xf32> -> vector<8x32xf32>
    %128 = vector.broadcast %124 : vector<8x1xf32> to vector<8x32xf32>
    %129 = arith.mulf %127, %128 : vector<8x32xf32>
    %130 = tpu.concatenate %69, %89, %109, %129 in 1 : vector<8x32xf32>, vector<8x32xf32>, vector<8x32xf32>, vector<8x32xf32> -> vector<8x128xf32>
    %131 = arith.truncf %130 : vector<8x128xf32> to vector<8x128xbf16>
    %c0_51 = arith.constant 0 : index
    %c0_52 = arith.constant 0 : index
    %c0_53 = arith.constant 0 : index
    %132 = vector.load %arg8[%c0_51, %c0_52, %c0_53] : memref<1x128x128xbf16, #tpu.memory_space<vmem>>, vector<1x128x128xbf16>
    %133 = vector.shape_cast %132 : vector<1x128x128xbf16> to vector<128x128xbf16>
    %cst_54 = arith.constant dense<0.000000e+00> : vector<8x128xf32>
    %134 = tpu.matmul %131, %133, %cst_54 {dimension_numbers = #tpu.dot_dimension_numbers<[1], [0], [0], [1], [0, 0, 1, 1], [], []>} : vector<8x128xbf16>, vector<128x128xbf16>, vector<8x128xf32> -> vector<8x128xf32>
    %135 = arith.addf %3, %134 : vector<8x128xf32>
    %c0_55 = arith.constant 0 : index
    %c0_56 = arith.constant 0 : index
    %c0_57 = arith.constant 0 : index
    %136 = vector.load %arg9[%c0_55, %c0_56, %c0_57] : memref<1x1x128xf32, #tpu.memory_space<vmem>>, vector<1x1x128xf32>
    %137 = vector.shape_cast %136 : vector<1x1x128xf32> to vector<1x128xf32>
    %138 = arith.mulf %135, %135 : vector<8x128xf32>
    %cst_58 = arith.constant dense<0.000000e+00> : vector<8xf32>
    %139 = vector.multi_reduction <add>, %138, %cst_58 [1] : vector<8x128xf32> to vector<8xf32>
    %140 = vector.shape_cast %139 : vector<8xf32> to vector<8x1xf32>
    %cst_59 = arith.constant 1.280000e+02 : f32
    %141 = vector.broadcast %cst_59 : f32 to vector<8x1xf32>
    %142 = arith.divf %140, %141 : vector<8x1xf32>
    %cst_60 = arith.constant 9.99999997E-7 : f32
    %143 = vector.broadcast %cst_60 : f32 to vector<8x1xf32>
    %144 = arith.addf %142, %143 : vector<8x1xf32>
    %145 = math.rsqrt %144 : vector<8x1xf32>
    %146 = vector.broadcast %145 : vector<8x1xf32> to vector<8x128xf32>
    %147 = arith.mulf %135, %146 : vector<8x128xf32>
    %148 = vector.broadcast %137 : vector<1x128xf32> to vector<8x128xf32>
    %149 = arith.mulf %147, %148 : vector<8x128xf32>
    %150 = arith.truncf %149 : vector<8x128xf32> to vector<8x128xbf16>
    %c0_61 = arith.constant 0 : index
    %c0_62 = arith.constant 0 : index
    %c0_63 = arith.constant 0 : index
    %151 = vector.load %arg10[%c0_61, %c0_62, %c0_63] : memref<1x128x512xbf16, #tpu.memory_space<vmem>>, vector<1x128x512xbf16>
    %152 = vector.shape_cast %151 : vector<1x128x512xbf16> to vector<128x512xbf16>
    %cst_64 = arith.constant dense<0.000000e+00> : vector<8x512xf32>
    %153 = tpu.matmul %150, %152, %cst_64 {dimension_numbers = #tpu.dot_dimension_numbers<[1], [0], [0], [1], [0, 0, 1, 1], [], []>} : vector<8x128xbf16>, vector<128x512xbf16>, vector<8x512xf32> -> vector<8x512xf32>
    %154 = vector.extract_strided_slice %153 {offsets = [0, 0], sizes = [8, 256], strides = [1, 1]} : vector<8x512xf32> to vector<8x256xf32>
    %155 = vector.extract_strided_slice %153 {offsets = [0, 256], sizes = [8, 256], strides = [1, 1]} : vector<8x512xf32> to vector<8x256xf32>
    %156 = arith.negf %154 : vector<8x256xf32>
    %157 = math.exp %156 : vector<8x256xf32>
    %cst_65 = arith.constant 1.000000e+00 : f32
    %158 = vector.broadcast %cst_65 : f32 to vector<8x256xf32>
    %159 = arith.addf %158, %157 : vector<8x256xf32>
    %160 = arith.divf %158, %159 : vector<8x256xf32>
    %161 = arith.mulf %154, %160 : vector<8x256xf32>
    %162 = arith.mulf %161, %155 : vector<8x256xf32>
    %163 = arith.truncf %162 : vector<8x256xf32> to vector<8x256xbf16>
    %c0_66 = arith.constant 0 : index
    %c0_67 = arith.constant 0 : index
    %c0_68 = arith.constant 0 : index
    %164 = vector.load %arg11[%c0_66, %c0_67, %c0_68] : memref<1x256x128xbf16, #tpu.memory_space<vmem>>, vector<1x256x128xbf16>
    %165 = vector.shape_cast %164 : vector<1x256x128xbf16> to vector<256x128xbf16>
    %cst_69 = arith.constant dense<0.000000e+00> : vector<8x128xf32>
    %166 = tpu.matmul %163, %165, %cst_69 {dimension_numbers = #tpu.dot_dimension_numbers<[1], [0], [0], [1], [0, 0, 1, 1], [], []>} : vector<8x256xbf16>, vector<256x128xbf16>, vector<8x128xf32> -> vector<8x128xf32>
    %167 = arith.addf %135, %166 : vector<8x128xf32>
    %c0_70 = arith.constant 0 : index
    %c0_71 = arith.constant 0 : index
    %168 = vector.load %arg15[%c0_70, %c0_71] : memref<8x128xf32, #tpu.memory_space<vmem>>, vector<8x128xf32>
    tpu.vector_store %arg15[%c0_70, %c0_71], %167 {strides = array<i32>} : memref<8x128xf32, #tpu.memory_space<vmem>>, vector<8x128xf32>,
    %c0_72 = arith.constant 0 : index
    %c0_73 = arith.constant 0 : index
    %c0_74 = arith.constant 0 : index
    %169 = vector.load %arg12[%c0_72, %c0_73, %c0_74] : memref<1x8x128xf32, #tpu.memory_space<vmem>>, vector<1x8x128xf32>
    %170 = vector.shape_cast %169 : vector<1x8x128xf32> to vector<8x128xf32>
    %171 = vector.shape_cast %167 : vector<8x128xf32> to vector<1x8x128xf32>
    tpu.vector_store %arg12[%c0_72, %c0_73, %c0_74], %171 {strides = array<i32>} : memref<1x8x128xf32, #tpu.memory_space<vmem>>, vector<1x8x128xf32>,
    return
  }
  func.func @transform_0(%arg0: i32, %arg1: i32) -> (i32, i32, i32) {
    %c0_i32 = arith.constant 0 : i32
    %c0_i32_0 = arith.constant 0 : i32
    %c0_i32_1 = arith.constant 0 : i32
    return %arg0, %c0_i32, %c0_i32_0 : i32, i32, i32
  }
  func.func @transform_1(%arg0: i32, %arg1: i32) -> (i32, i32, i32) {
    %c0_i32 = arith.constant 0 : i32
    %c0_i32_0 = arith.constant 0 : i32
    %c0_i32_1 = arith.constant 0 : i32
    return %arg1, %c0_i32, %c0_i32_0 : i32, i32, i32
  }
  func.func @transform_2(%arg0: i32, %arg1: i32) -> (i32, i32, i32) {
    %c0_i32 = arith.constant 0 : i32
    %c0_i32_0 = arith.constant 0 : i32
    %c0_i32_1 = arith.constant 0 : i32
    return %arg1, %c0_i32, %c0_i32_0 : i32, i32, i32
  }
  func.func @transform_3(%arg0: i32, %arg1: i32) -> (i32, i32) {
    %c0_i32 = arith.constant 0 : i32
    %c0_i32_0 = arith.constant 0 : i32
    %c0_i32_1 = arith.constant 0 : i32
    return %c0_i32, %c0_i32_0 : i32, i32
  }
  func.func @transform_4(%arg0: i32, %arg1: i32) -> (i32, i32) {
    %c0_i32 = arith.constant 0 : i32
    %c0_i32_0 = arith.constant 0 : i32
    %c0_i32_1 = arith.constant 0 : i32
    return %c0_i32, %c0_i32_0 : i32, i32
  }
  func.func @transform_5(%arg0: i32, %arg1: i32) -> (i32, i32) {
    %c0_i32 = arith.constant 0 : i32
    %c0_i32_0 = arith.constant 0 : i32
    %c0_i32_1 = arith.constant 0 : i32
    return %c0_i32, %c0_i32_0 : i32, i32
  }
  func.func @transform_6(%arg0: i32, %arg1: i32) -> (i32, i32, i32) {
    %c0_i32 = arith.constant 0 : i32
    %c0_i32_0 = arith.constant 0 : i32
    %c0_i32_1 = arith.constant 0 : i32
    return %arg1, %c0_i32, %c0_i32_0 : i32, i32, i32
  }
  func.func @transform_7(%arg0: i32, %arg1: i32) -> (i32, i32, i32) {
    %c0_i32 = arith.constant 0 : i32
    %c0_i32_0 = arith.constant 0 : i32
    %c0_i32_1 = arith.constant 0 : i32
    return %arg1, %c0_i32, %c0_i32_0 : i32, i32, i32
  }
  func.func @transform_8(%arg0: i32, %arg1: i32) -> (i32, i32, i32) {
    %c0_i32 = arith.constant 0 : i32
    %c0_i32_0 = arith.constant 0 : i32
    %c0_i32_1 = arith.constant 0 : i32
    return %arg1, %c0_i32, %c0_i32_0 : i32, i32, i32
  }
  func.func @transform_9(%arg0: i32, %arg1: i32) -> (i32, i32, i32) {
    %c0_i32 = arith.constant 0 : i32
    %c0_i32_0 = arith.constant 0 : i32
    %c0_i32_1 = arith.constant 0 : i32
    return %arg1, %c0_i32, %c0_i32_0 : i32, i32, i32
  }
  func.func @transform_10(%arg0: i32, %arg1: i32) -> (i32, i32, i32) {
    %c0_i32 = arith.constant 0 : i32
    %c0_i32_0 = arith.constant 0 : i32
    %c0_i32_1 = arith.constant 0 : i32
    return %arg0, %c0_i32, %c0_i32_0 : i32, i32, i32
  }
  func.func @transform_11(%arg0: i32, %arg1: i32) -> (i32, i32, i32, i32) {
    %c0_i32 = arith.constant 0 : i32
    %c0_i32_0 = arith.constant 0 : i32
    %c0_i32_1 = arith.constant 0 : i32
    return %arg1, %arg0, %c0_i32, %c0_i32_0 : i32, i32, i32, i32
  }
  func.func @transform_12(%arg0: i32, %arg1: i32) -> (i32, i32, i32, i32) {
    %c0_i32 = arith.constant 0 : i32
    %c0_i32_0 = arith.constant 0 : i32
    %c0_i32_1 = arith.constant 0 : i32
    return %arg1, %arg0, %c0_i32, %c0_i32_0 : i32, i32, i32, i32
  }
}

</mosaic_0001>

<llo_original>
// kernel: tpu_custom_call.1
$region0: #{tpu_custom_call.1}
  #allocation0 [shape = 'u32[]', space=smem, size = 0x4, offset = 0x4, fixed_abs, tag = 'smem constant byte address 0x4 - core index']
  #allocation1 [shape = 'u32[144,128]{1,0:T(1,128)}', space=vmem, size = 0x12000, scoped, tag = 'internal scratch']
  #allocation2 [shape = 'f32[8,128]{1,0:T(8,128)}', space=vmem, size = 0x1000, scoped, tag = 'scratch operand']
  %s0 = inlined_call_operand.hbm [shape: f32[2,8,128], index: 0, kind: input, shape index: {}]
  %s1 = inlined_call_operand.hbm [shape: f32[2,1,128], index: 1, kind: input, shape index: {}]
  %s2 = inlined_call_operand.hbm [shape: bf16[2,128,384], index: 2, kind: input, shape index: {}]
  %s3 = inlined_call_operand.hbm [shape: bf16[128,128], index: 3, kind: input, shape index: {}]
  %s4 = inlined_call_operand.hbm [shape: f32[8,128], index: 4, kind: input, shape index: {}]
  %s5 = inlined_call_operand.vmem [shape: f32[8,128], index: 5, kind: input, shape index: {}]
  %s6 = inlined_call_operand.hbm [shape: bf16[2,128,128], index: 6, kind: input, shape index: {}]
  %s7 = inlined_call_operand.vmem [shape: f32[2,1,128], index: 7, kind: input, shape index: {}]
  %s8 = inlined_call_operand.hbm [shape: bf16[2,128,512], index: 8, kind: input, shape index: {}]
  %s9 = inlined_call_operand.hbm [shape: bf16[2,256,128], index: 9, kind: input, shape index: {}]
  %s10 = inlined_call_operand.hbm [shape: f32[2,8,128], index: 10, kind: output, shape index: {0}]
  %s11 = inlined_call_operand.hbm [shape: f32[2,2,8,128], index: 11, kind: output, shape index: {1}]
  %s12 = inlined_call_operand.hbm [shape: f32[2,2,8,128], index: 12, kind: output, shape index: {2}]
  %13 = xla_tuple %s10, %s11, %s12
  %s14 = sld [smem:[#allocation0]]
  $region125: #{tpu_custom_call.1} parent=0
    _
  %s16 = ssub.s32 1, %s14
  %s17 = scalar_select 0, %s16, %s14
  $region1: #{tpu_custom_call.1} parent=0
    #allocation3 [shape = 'u8[8192]{0}', space=vmem, size = 0x2000, scoped, tag = 'input window, operand 0']
    #allocation4 [shape = 's32[2]{0}', space=sflag, size = 0x8, scoped, tag = 'scoped memory for tpu_custom_call.1']
    #allocation5 [shape = 's32[2]{0}', space=sflag, size = 0x8, scoped, tag = 'scoped memory for tpu_custom_call.1']
    #allocation6 [shape = 'u8[1024]{0}', space=vmem, size = 0x400, scoped, tag = 'input window, operand 1']
    #allocation7 [shape = 's32[2]{0}', space=sflag, size = 0x8, scoped, tag = 'scoped memory for tpu_custom_call.1']
    #allocation8 [shape = 'u8[196608]{0}', space=vmem, size = 0x30000, scoped, tag = 'input window, operand 2']
    #allocation9 [shape = 'u8[32768]{0}', space=vmem, size = 0x8000, scoped, tag = 'input window, operand 3, single buffered']
    #allocation10 [shape = 's32[1]{0}', space=sflag, size = 0x4, scoped, tag = 'scoped memory for tpu_custom_call.1']
    #allocation11 [shape = 'u8[4096]{0}', space=vmem, size = 0x1000, scoped, tag = 'input window, operand 4, single buffered']
    #allocation12 [shape = 'u8[65536]{0}', space=vmem, size = 0x10000, scoped, tag = 'input window, operand 6']
    #allocation13 [shape = 's32[2]{0}', space=sflag, size = 0x8, scoped, tag = 'scoped memory for tpu_custom_call.1']
    #allocation14 [shape = 'u8[262144]{0}', space=vmem, size = 0x40000, scoped, tag = 'input window, operand 8']
    #allocation15 [shape = 'u8[131072]{0}', space=vmem, size = 0x20000, scoped, tag = 'input window, operand 9']
    #allocation16 [shape = 's32[2]{0}', space=sflag, size = 0x8, scoped, tag = 'scoped memory for tpu_custom_call.1']
    #allocation17 [shape = 'u8[8192]{0}', space=vmem, size = 0x2000, scoped, tag = 'output window, operand 0']
    #allocation18 [shape = 'u8[8192]{0}', space=vmem, size = 0x2000, scoped, tag = 'output window, operand 1']
    #allocation19 [shape = 's32[2]{0}', space=sflag, size = 0x8, scoped, tag = 'scoped memory for tpu_custom_call.1']
    #allocation20 [shape = 'u8[8192]{0}', space=vmem, size = 0x2000, scoped, tag = 'output window, operand 2']
    %18 = vsyncpa [#allocation4], 0
    %s19 = scalar_lea.sflag [#allocation4], 1
    %20 = vsyncpa %s19, 0
    %21 = vsyncpa [#allocation7], 0
    %s22 = scalar_lea.sflag [#allocation7], 1
    %23 = vsyncpa %s22, 0
    %24 = vsyncpa [#allocation10], 0
    %25 = vsyncpa [#allocation13], 0
    %s26 = scalar_lea.sflag [#allocation13], 1
    %27 = vsyncpa %s26, 0
    %28 = vsyncpa [#allocation16], 0
    %s29 = scalar_lea.sflag [#allocation16], 1
    %30 = vsyncpa %s29, 0
    %31 = vsyncpa [#allocation5], 0
    %s32 = scalar_lea.sflag [#allocation5], 1
    %33 = vsyncpa %s32, 0
    %34 = vsyncpa [#allocation19], 0
    %s35 = scalar_lea.sflag [#allocation19], 1
    %36 = vsyncpa %s35, 0
    loop: start=0, step=1, limit=6
    $region2: #{tpu_custom_call.1} parent=1 // loop_pre_header
      _
    $region3: #{tpu_custom_call.1} parent=1 // loop_header
      %s38 = sphi 0, %s42
      %p39 = scmp.ge.s32.totalorder %s38, 6
      %s45 = sphi 0, %s57
      %s46 = sphi 0, %s53
      %s47 = sphi 0, %s45
      %s48 = sphi 0, %s46
      %s49 = sphi 0, %s47
      %s50 = sphi 0, %s48
      %s60 = sphi 0, %s62
      %s63 = sphi 0, %s60
      %s64 = sphi 0, %s63
      %s80 = sphi 0, %s64
      %s86 = sphi 0, %s88
      %s89 = sphi 0, %s86
      %s90 = sphi 0, %s89
      %s106 = sphi 0, %s90
      %s112 = sphi 0, %s114
      %s115 = sphi 0, %s112
      %s116 = sphi 0, %s115
      %s132 = sphi 0, %s116
      %s136 = sphi 0, %s136
      %s138 = sphi 0, %s136
      %s139 = sphi 0, %s138
      %s153 = sphi 0, %s139
      %s157 = sphi 0, %s157
      %s159 = sphi 0, %s157
      %s160 = sphi 0, %s159
      %s174 = sphi 0, %s160
      %s178 = sphi 0, %s178
      %s180 = sphi 0, %s178
      %s181 = sphi 0, %s180
      %s195 = sphi 0, %s181
      %s201 = sphi 0, %s203
      %s204 = sphi 0, %s201
      %s205 = sphi 0, %s204
      %s221 = sphi 0, %s205
      %s227 = sphi 0, %s229
      %s230 = sphi 0, %s227
      %s231 = sphi 0, %s230
      %s247 = sphi 0, %s231
      %s253 = sphi 0, %s255
      %s256 = sphi 0, %s253
      %s257 = sphi 0, %s256
      %s273 = sphi 0, %s257
      %s279 = sphi 0, %s281
      %s282 = sphi 0, %s279
      %s283 = sphi 0, %s282
      %s299 = sphi 0, %s283
      %s305 = sphi 0, %s307
      %s308 = sphi 0, %s305
      %s309 = sphi 0, %s308
      %s325 = sphi 0, %s309
      %s333 = sphi 0, %s335
      %s336 = sphi 0, %s333
      %s337 = sphi 0, %s336
      %s353 = sphi 0, %s337
      %s361 = sphi 0, %s363
      %s364 = sphi 0, %s361
      %s365 = sphi 0, %s364
      %s381 = sphi 0, %s365
    $region4: #{tpu_custom_call.1} parent=1 // loop_header_branch
      %41 = sbr.rel (%p39) target = $region8
    $region5: #{tpu_custom_call.1} parent=1 // loop_body
      %s43 = ssub.s32 %s38, 1
      %s44 = ssub.s32 %s38, 2
      %s51 = sadd.s32 1, %s46
      %p52 = scmp.ge.s32.totalorder %s51, 2
      %s53 = scalar_select %p52, 0, %s51
      %s54 = sadd.s32 1, %s45
      %s55 = scalar_select %p52, %s54, %s45
      %p56 = scmp.ge.s32.totalorder %s55, 2
      %s57 = scalar_select %p56, 0, %s55
      %s58 = ssub.s32 %s45, %s57
      %p59 = scmp.eq.s32.totalorder %s58, 0
      %s61 = sadd.s32 %s60, 1
      %s62 = scalar_select %p59, %s60, %s61
      %p65 = pneg %p59
      %p66 = scmp.eq.s32.totalorder %s38, 3
      %p67 = por %p65, %p66
      %p68 = scmp.ne.s32.totalorder %s60, %s63
      %p69 = scmp.eq.s32.totalorder %s38, 0
      %p70 = por %p68, %p69
      %p71 = scmp.ne.s32.totalorder %s60, %s63
      %p72 = scmp.eq.s32.totalorder %s43, 3
      %p73 = por %p71, %p72
      %p74 = scmp.ne.s32.totalorder %s63, %s64
      %p75 = scmp.eq.s32.totalorder %s43, 0
      %p76 = por %p74, %p75
      %p77 = scmp.ne.s32.totalorder %s63, %s64
      %p78 = scmp.eq.s32.totalorder %s44, 3
      %p79 = por %p77, %p78
      %p81 = scmp.ne.s32.totalorder %s64, %s80
      %p82 = scmp.eq.s32.totalorder %s44, 0
      %p83 = por %p81, %p82
      %s84 = ssub.s32 %s46, %s53
      %p85 = scmp.eq.s32.totalorder %s84, 0
      %s87 = sadd.s32 %s86, 1
      %s88 = scalar_select %p85, %s86, %s87
      %p91 = pneg %p85
      %p92 = scmp.eq.s32.totalorder %s38, 3
      %p93 = por %p91, %p92
      %p94 = scmp.ne.s32.totalorder %s86, %s89
      %p95 = scmp.eq.s32.totalorder %s38, 0
      %p96 = por %p94, %p95
      %p97 = scmp.ne.s32.totalorder %s86, %s89
      %p98 = scmp.eq.s32.totalorder %s43, 3
      %p99 = por %p97, %p98
      %p100 = scmp.ne.s32.totalorder %s89, %s90
      %p101 = scmp.eq.s32.totalorder %s43, 0
      %p102 = por %p100, %p101
      %p103 = scmp.ne.s32.totalorder %s89, %s90
      %p104 = scmp.eq.s32.totalorder %s44, 3
      %p105 = por %p103, %p104
      %p107 = scmp.ne.s32.totalorder %s90, %s106
      %p108 = scmp.eq.s32.totalorder %s44, 0
      %p109 = por %p107, %p108
      %s110 = ssub.s32 %s46, %s53
      %p111 = scmp.eq.s32.totalorder %s110, 0
      %s113 = sadd.s32 %s112, 1
      %s114 = scalar_select %p111, %s112, %s113
      %p117 = pneg %p111
      %p118 = scmp.eq.s32.totalorder %s38, 3
      %p119 = por %p117, %p118
      %p120 = scmp.ne.s32.totalorder %s112, %s115
      %p121 = scmp.eq.s32.totalorder %s38, 0
      %p122 = por %p120, %p121
      %p123 = scmp.ne.s32.totalorder %s112, %s115
      %p124 = scmp.eq.s32.totalorder %s43, 3
      %p125 = por %p123, %p124
      %p126 = scmp.ne.s32.totalorder %s115, %s116
      %p127 = scmp.eq.s32.totalorder %s43, 0
      %p128 = por %p126, %p127
      %p129 = scmp.ne.s32.totalorder %s115, %s116
      %p130 = scmp.eq.s32.totalorder %s44, 3
      %p131 = por %p129, %p130
      %p133 = scmp.ne.s32.totalorder %s116, %s132
      %p134 = scmp.eq.s32.totalorder %s44, 0
      %p135 = por %p133, %p134
      %s137 = sadd.s32 %s136, 1
      %p140 = scmp.eq.s32.totalorder %s38, 3
      %p141 = scmp.ne.s32.totalorder %s136, %s138
      %p142 = scmp.eq.s32.totalorder %s38, 0
      %p143 = por %p141, %p142
      %p144 = scmp.ne.s32.totalorder %s136, %s138
      %p145 = scmp.eq.s32.totalorder %s43, 3
      %p146 = por %p144, %p145
      %p147 = scmp.ne.s32.totalorder %s138, %s139
      %p148 = scmp.eq.s32.totalorder %s43, 0
      %p149 = por %p147, %p148
      %p150 = scmp.ne.s32.totalorder %s138, %s139
      %p151 = scmp.eq.s32.totalorder %s44, 3
      %p152 = por %p150, %p151
      %p154 = scmp.ne.s32.totalorder %s139, %s153
      %p155 = scmp.eq.s32.totalorder %s44, 0
      %p156 = por %p154, %p155
      %s158 = sadd.s32 %s157, 1
      %p161 = scmp.eq.s32.totalorder %s38, 3
      %p162 = scmp.ne.s32.totalorder %s157, %s159
      %p163 = scmp.eq.s32.totalorder %s38, 0
      %p164 = por %p162, %p163
      %p165 = scmp.ne.s32.totalorder %s157, %s159
      %p166 = scmp.eq.s32.totalorder %s43, 3
      %p167 = por %p165, %p166
      %p168 = scmp.ne.s32.totalorder %s159, %s160
      %p169 = scmp.eq.s32.totalorder %s43, 0
      %p170 = por %p168, %p169
      %p171 = scmp.ne.s32.totalorder %s159, %s160
      %p172 = scmp.eq.s32.totalorder %s44, 3
      %p173 = por %p171, %p172
      %p175 = scmp.ne.s32.totalorder %s160, %s174
      %p176 = scmp.eq.s32.totalorder %s44, 0
      %p177 = por %p175, %p176
      %s179 = sadd.s32 %s178, 1
      %p182 = scmp.eq.s32.totalorder %s38, 3
      %p183 = scmp.ne.s32.totalorder %s178, %s180
      %p184 = scmp.eq.s32.totalorder %s38, 0
      %p185 = por %p183, %p184
      %p186 = scmp.ne.s32.totalorder %s178, %s180
      %p187 = scmp.eq.s32.totalorder %s43, 3
      %p188 = por %p186, %p187
      %p189 = scmp.ne.s32.totalorder %s180, %s181
      %p190 = scmp.eq.s32.totalorder %s43, 0
      %p191 = por %p189, %p190
      %p192 = scmp.ne.s32.totalorder %s180, %s181
      %p193 = scmp.eq.s32.totalorder %s44, 3
      %p194 = por %p192, %p193
      %p196 = scmp.ne.s32.totalorder %s181, %s195
      %p197 = scmp.eq.s32.totalorder %s44, 0
      %p198 = por %p196, %p197
      %s199 = ssub.s32 %s46, %s53
      %p200 = scmp.eq.s32.totalorder %s199, 0
      %s202 = sadd.s32 %s201, 1
      %s203 = scalar_select %p200, %s201, %s202
      %p206 = pneg %p200
      %p207 = scmp.eq.s32.totalorder %s38, 3
      %p208 = por %p206, %p207
      %p209 = scmp.ne.s32.totalorder %s201, %s204
      %p210 = scmp.eq.s32.totalorder %s38, 0
      %p211 = por %p209, %p210
      %p212 = scmp.ne.s32.totalorder %s201, %s204
      %p213 = scmp.eq.s32.totalorder %s43, 3
      %p214 = por %p212, %p213
      %p215 = scmp.ne.s32.totalorder %s204, %s205
      %p216 = scmp.eq.s32.totalorder %s43, 0
      %p217 = por %p215, %p216
      %p218 = scmp.ne.s32.totalorder %s204, %s205
      %p219 = scmp.eq.s32.totalorder %s44, 3
      %p220 = por %p218, %p219
      %p222 = scmp.ne.s32.totalorder %s205, %s221
      %p223 = scmp.eq.s32.totalorder %s44, 0
      %p224 = por %p222, %p223
      %s225 = ssub.s32 %s46, %s53
      %p226 = scmp.eq.s32.totalorder %s225, 0
      %s228 = sadd.s32 %s227, 1
      %s229 = scalar_select %p226, %s227, %s228
      %p232 = pneg %p226
      %p233 = scmp.eq.s32.totalorder %s38, 3
      %p234 = por %p232, %p233
      %p235 = scmp.ne.s32.totalorder %s227, %s230
      %p236 = scmp.eq.s32.totalorder %s38, 0
      %p237 = por %p235, %p236
      %p238 = scmp.ne.s32.totalorder %s227, %s230
      %p239 = scmp.eq.s32.totalorder %s43, 3
      %p240 = por %p238, %p239
      %p241 = scmp.ne.s32.totalorder %s230, %s231
      %p242 = scmp.eq.s32.totalorder %s43, 0
      %p243 = por %p241, %p242
      %p244 = scmp.ne.s32.totalorder %s230, %s231
      %p245 = scmp.eq.s32.totalorder %s44, 3
      %p246 = por %p244, %p245
      %p248 = scmp.ne.s32.totalorder %s231, %s247
      %p249 = scmp.eq.s32.totalorder %s44, 0
      %p250 = por %p248, %p249
      %s251 = ssub.s32 %s46, %s53
      %p252 = scmp.eq.s32.totalorder %s251, 0
      %s254 = sadd.s32 %s253, 1
      %s255 = scalar_select %p252, %s253, %s254
      %p258 = pneg %p252
      %p259 = scmp.eq.s32.totalorder %s38, 3
      %p260 = por %p258, %p259
      %p261 = scmp.ne.s32.totalorder %s253, %s256
      %p262 = scmp.eq.s32.totalorder %s38, 0
      %p263 = por %p261, %p262
      %p264 = scmp.ne.s32.totalorder %s253, %s256
      %p265 = scmp.eq.s32.totalorder %s43, 3
      %p266 = por %p264, %p265
      %p267 = scmp.ne.s32.totalorder %s256, %s257
      %p268 = scmp.eq.s32.totalorder %s43, 0
      %p269 = por %p267, %p268
      %p270 = scmp.ne.s32.totalorder %s256, %s257
      %p271 = scmp.eq.s32.totalorder %s44, 3
      %p272 = por %p270, %p271
      %p274 = scmp.ne.s32.totalorder %s257, %s273
      %p275 = scmp.eq.s32.totalorder %s44, 0
      %p276 = por %p274, %p275
      %s277 = ssub.s32 %s46, %s53
      %p278 = scmp.eq.s32.totalorder %s277, 0
      %s280 = sadd.s32 %s279, 1
      %s281 = scalar_select %p278, %s279, %s280
      %p284 = pneg %p278
      %p285 = scmp.eq.s32.totalorder %s38, 3
      %p286 = por %p284, %p285
      %p287 = scmp.ne.s32.totalorder %s279, %s282
      %p288 = scmp.eq.s32.totalorder %s38, 0
      %p289 = por %p287, %p288
      %p290 = scmp.ne.s32.totalorder %s279, %s282
      %p291 = scmp.eq.s32.totalorder %s43, 3
      %p292 = por %p290, %p291
      %p293 = scmp.ne.s32.totalorder %s282, %s283
      %p294 = scmp.eq.s32.totalorder %s43, 0
      %p295 = por %p293, %p294
      %p296 = scmp.ne.s32.totalorder %s282, %s283
      %p297 = scmp.eq.s32.totalorder %s44, 3
      %p298 = por %p296, %p297
      %p300 = scmp.ne.s32.totalorder %s283, %s299
      %p301 = scmp.eq.s32.totalorder %s44, 0
      %p302 = por %p300, %p301
      %s303 = ssub.s32 %s45, %s57
      %p304 = scmp.eq.s32.totalorder %s303, 0
      %s306 = sadd.s32 %s305, 1
      %s307 = scalar_select %p304, %s305, %s306
      %p310 = pneg %p304
      %p311 = scmp.eq.s32.totalorder %s38, 3
      %p312 = por %p310, %p311
      %p313 = scmp.ne.s32.totalorder %s305, %s308
      %p314 = scmp.eq.s32.totalorder %s38, 0
      %p315 = por %p313, %p314
      %p316 = scmp.ne.s32.totalorder %s305, %s308
      %p317 = scmp.eq.s32.totalorder %s43, 3
      %p318 = por %p316, %p317
      %p319 = scmp.ne.s32.totalorder %s308, %s309
      %p320 = scmp.eq.s32.totalorder %s43, 0
      %p321 = por %p319, %p320
      %p322 = scmp.ne.s32.totalorder %s308, %s309
      %p323 = scmp.eq.s32.totalorder %s44, 3
      %p324 = por %p322, %p323
      %p326 = scmp.ne.s32.totalorder %s309, %s325
      %p327 = scmp.eq.s32.totalorder %s44, 0
      %p328 = por %p326, %p327
      %s329 = ssub.s32 %s46, %s53
      %s330 = ssub.s32 %s45, %s57
      %s331 = sor.u32 %s329, %s330
      %p332 = scmp.eq.s32.totalorder %s331, 0
      %s334 = sadd.s32 %s333, 1
      %s335 = scalar_select %p332, %s333, %s334
      %p338 = pneg %p332
      %p339 = scmp.eq.s32.totalorder %s38, 3
      %p340 = por %p338, %p339
      %p341 = scmp.ne.s32.totalorder %s333, %s336
      %p342 = scmp.eq.s32.totalorder %s38, 0
      %p343 = por %p341, %p342
      %p344 = scmp.ne.s32.totalorder %s333, %s336
      %p345 = scmp.eq.s32.totalorder %s43, 3
      %p346 = por %p344, %p345
      %p347 = scmp.ne.s32.totalorder %s336, %s337
      %p348 = scmp.eq.s32.totalorder %s43, 0
      %p349 = por %p347, %p348
      %p350 = scmp.ne.s32.totalorder %s336, %s337
      %p351 = scmp.eq.s32.totalorder %s44, 3
      %p352 = por %p350, %p351
      %p354 = scmp.ne.s32.totalorder %s337, %s353
      %p355 = scmp.eq.s32.totalorder %s44, 0
      %p356 = por %p354, %p355
      %s357 = ssub.s32 %s46, %s53
      %s358 = ssub.s32 %s45, %s57
      %s359 = sor.u32 %s357, %s358
      %p360 = scmp.eq.s32.totalorder %s359, 0
      %s362 = sadd.s32 %s361, 1
      %s363 = scalar_select %p360, %s361, %s362
      %p366 = pneg %p360
      %p367 = scmp.eq.s32.totalorder %s38, 3
      %p368 = por %p366, %p367
      %p369 = scmp.ne.s32.totalorder %s361, %s364
      %p370 = scmp.eq.s32.totalorder %s38, 0
      %p371 = por %p369, %p370
      %p372 = scmp.ne.s32.totalorder %s361, %s364
      %p373 = scmp.eq.s32.totalorder %s43, 3
      %p374 = por %p372, %p373
      %p375 = scmp.ne.s32.totalorder %s364, %s365
      %p376 = scmp.eq.s32.totalorder %s43, 0
      %p377 = por %p375, %p376
      %p378 = scmp.ne.s32.totalorder %s364, %s365
      %p379 = scmp.eq.s32.totalorder %s44, 3
      %p380 = por %p378, %p379
      %p382 = scmp.ne.s32.totalorder %s365, %s381
      %p383 = scmp.eq.s32.totalorder %s44, 0
      %p384 = por %p382, %p383
      %p385 = scmp.le.s32.totalorder 1, %s38
      %p386 = scmp.lt.s32.totalorder %s38, 5
      %p387 = pnand %p385, %p386
      %p388 = pneg %p387
      // Predicated region
      $region9: #{tpu_custom_call.1} parent=5 // pred_check
        _
      $region10: #{tpu_custom_call.1} parent=5 // pred_check_branch
        %390 = sbr.rel (%p387) target = $region12
      $region11: #{tpu_custom_call.1} parent=5 // pred_region
        %s391 = ssub.s32 %s38, 1
        // Predicated region
        $region13: #{tpu_custom_call.1} parent=11 // pred_check
          %p392 = pneg %p149
        $region14: #{tpu_custom_call.1} parent=11 // pred_check_branch
          %394 = sbr.rel (%p392) target = $region16
        $region15: #{tpu_custom_call.1} parent=11 // pred_region
          %s396 = ssub.s32 1024, 1024
          %397 = vsyncadd [#allocation10], %s396
          %s398 = sshll.u32 [#allocation9], 4
          %s399 = int_to_ptr.vmem [resolvable:$true] %s398
          %404 = dma.hbm_to_vmem [thread:$0]  %s3, 1024, %s399, [#allocation10], 64, 64, 4
        $region16: #{tpu_custom_call.1} parent=11 // pred_fallthru
          _
        // Predicated region
        $region17: #{tpu_custom_call.1} parent=11 // pred_check
          %p405 = pneg %p170
        $region18: #{tpu_custom_call.1} parent=11 // pred_check_branch
          %407 = sbr.rel (%p405) target = $region20
        $region19: #{tpu_custom_call.1} parent=11 // pred_region
          %s409 = ssub.s32 128, 128
          %410 = vsyncadd [#allocation10], %s409
          %s412 = sshll.u32 [#allocation11], 4
          %s413 = int_to_ptr.vmem [resolvable:$true] %s412
          %415 = dma.hbm_to_vmem [thread:$0]  %s4, 128, %s413, [#allocation10]
        $region20: #{tpu_custom_call.1} parent=11 // pred_fallthru
          _
        // Predicated region
        $region21: #{tpu_custom_call.1} parent=11 // pred_check
          %p416 = pneg %p191
        $region22: #{tpu_custom_call.1} parent=11 // pred_check_branch
          %418 = sbr.rel (%p416) target = $region24
        $region23: #{tpu_custom_call.1} parent=11 // pred_region
          _
        $region24: #{tpu_custom_call.1} parent=11 // pred_fallthru
          _
      $region12: #{tpu_custom_call.1} parent=5 // pred_fallthru
        _
      %p419 = scmp.lt.s32.totalorder %s38, 4
      // Predicated region
      $region25: #{tpu_custom_call.1} parent=5 // pred_check
        %p420 = pneg %p419
      $region26: #{tpu_custom_call.1} parent=5 // pred_check_branch
        %422 = sbr.rel (%p420) target = $region28
      $region27: #{tpu_custom_call.1} parent=5 // pred_region
        // Predicated region
        $region29: #{tpu_custom_call.1} parent=27 // pred_check
          %p423 = pneg %p70
        $region30: #{tpu_custom_call.1} parent=27 // pred_check_branch
          %425 = sbr.rel (%p423) target = $region32
        $region31: #{tpu_custom_call.1} parent=27 // pred_region
          %s426 = sand.u32 %s60, 1
          %s427 = scalar_lea.sflag [#allocation4], %s426
          %s428 = sand.u32 %s60, 1
          %s429 = smul.addr %s428, 8
          %s430 = scalar_lea.vmem [#allocation3], %s429
          %s432 = ssub.s32 128, 128
          %433 = vsyncadd %s427, %s432
          %s434 = smul.addr %s45, 128
          %s435 = scalar_lea.hbm %s0, %s434
          %s437 = sshll.u32 %s430, 4
          %s438 = int_to_ptr.vmem [resolvable:$true] %s437
          %440 = dma.hbm_to_vmem [thread:$0]  %s435, 128, %s438, %s427
        $region32: #{tpu_custom_call.1} parent=27 // pred_fallthru
          _
        // Predicated region
        $region33: #{tpu_custom_call.1} parent=27 // pred_check
          %p441 = pneg %p96
        $region34: #{tpu_custom_call.1} parent=27 // pred_check_branch
          %443 = sbr.rel (%p441) target = $region36
        $region35: #{tpu_custom_call.1} parent=27 // pred_region
          %s444 = sand.u32 %s38, 1
          %s445 = scalar_lea.sflag [#allocation7], %s444
          %s446 = sand.u32 %s86, 1
          %s447 = scalar_lea.vmem [#allocation6], %s446
          %s449 = ssub.s32 16, 16
          %450 = vsyncadd %s445, %s449
          %s451 = smul.addr %s46, 16
          %s452 = scalar_lea.hbm %s1, %s451
          %s454 = sshll.u32 %s447, 4
          %s455 = int_to_ptr.vmem [resolvable:$true] %s454
          %457 = dma.hbm_to_vmem [thread:$0]  %s452, 16, %s455, %s445
        $region36: #{tpu_custom_call.1} parent=27 // pred_fallthru
          _
        // Predicated region
        $region37: #{tpu_custom_call.1} parent=27 // pred_check
          %p458 = pneg %p122
        $region38: #{tpu_custom_call.1} parent=27 // pred_check_branch
          %460 = sbr.rel (%p458) target = $region40
        $region39: #{tpu_custom_call.1} parent=27 // pred_region
          %s461 = sand.u32 %s38, 1
          %s462 = scalar_lea.sflag [#allocation7], %s461
          %s463 = sand.u32 %s112, 1
          %s464 = smul.addr %s463, 192
          %s465 = scalar_lea.vmem [#allocation8], %s464
          %s467 = ssub.s32 3072, 3072
          %468 = vsyncadd %s462, %s467
          %s469 = smul.addr %s46, 48
          %s470 = smul.addr %s469, 64
          %s471 = scalar_lea.hbm %s2, %s470
          %s472 = sshll.u32 %s465, 4
          %s473 = int_to_ptr.vmem [resolvable:$true] %s472
          %478 = dma.hbm_to_vmem [thread:$0]  %s471, 3072, %s473, %s462, 192, 192, 12
        $region40: #{tpu_custom_call.1} parent=27 // pred_fallthru
          _
        // Predicated region
        $region41: #{tpu_custom_call.1} parent=27 // pred_check
          %p479 = pneg %p211
        $region42: #{tpu_custom_call.1} parent=27 // pred_check_branch
          %481 = sbr.rel (%p479) target = $region44
        $region43: #{tpu_custom_call.1} parent=27 // pred_region
          %s482 = sand.u32 %s38, 1
          %s483 = scalar_lea.sflag [#allocation13], %s482
          %s484 = sand.u32 %s201, 1
          %s485 = smul.addr %s484, 64
          %s486 = scalar_lea.vmem [#allocation12], %s485
          %s488 = ssub.s32 1024, 1024
          %489 = vsyncadd %s483, %s488
          %s490 = smul.addr %s46, 16
          %s491 = smul.addr %s490, 64
          %s492 = scalar_lea.hbm %s6, %s491
          %s493 = sshll.u32 %s486, 4
          %s494 = int_to_ptr.vmem [resolvable:$true] %s493
          %499 = dma.hbm_to_vmem [thread:$0]  %s492, 1024, %s494, %s483, 64, 64, 4
        $region44: #{tpu_custom_call.1} parent=27 // pred_fallthru
          _
        // Predicated region
        $region45: #{tpu_custom_call.1} parent=27 // pred_check
          %p500 = pneg %p237
        $region46: #{tpu_custom_call.1} parent=27 // pred_check_branch
          %502 = sbr.rel (%p500) target = $region48
        $region47: #{tpu_custom_call.1} parent=27 // pred_region
          %p503 = scmp.lt.s32.totalorder %s46, 1
          %s504 = scalar_select %p503, %s46, 1
          %s505 = scalar_lea.vmem %s7, %s504
        $region48: #{tpu_custom_call.1} parent=27 // pred_fallthru
          _
        // Predicated region
        $region49: #{tpu_custom_call.1} parent=27 // pred_check
          %p506 = pneg %p263
        $region50: #{tpu_custom_call.1} parent=27 // pred_check_branch
          %508 = sbr.rel (%p506) target = $region52
        $region51: #{tpu_custom_call.1} parent=27 // pred_region
          %s509 = sand.u32 %s38, 1
          %s510 = scalar_lea.sflag [#allocation13], %s509
          %s511 = sand.u32 %s253, 1
          %s512 = smul.addr %s511, 256
          %s513 = scalar_lea.vmem [#allocation14], %s512
          %s515 = ssub.s32 4096, 4096
          %516 = vsyncadd %s510, %s515
          %s517 = smul.addr %s46, 64
          %s518 = smul.addr %s517, 64
          %s519 = scalar_lea.hbm %s8, %s518
          %s520 = sshll.u32 %s513, 4
          %s521 = int_to_ptr.vmem [resolvable:$true] %s520
          %526 = dma.hbm_to_vmem [thread:$0]  %s519, 4096, %s521, %s510, 256, 256, 16
        $region52: #{tpu_custom_call.1} parent=27 // pred_fallthru
          _
        // Predicated region
        $region53: #{tpu_custom_call.1} parent=27 // pred_check
          %p527 = pneg %p289
        $region54: #{tpu_custom_call.1} parent=27 // pred_check_branch
          %529 = sbr.rel (%p527) target = $region56
        $region55: #{tpu_custom_call.1} parent=27 // pred_region
          %s530 = sand.u32 %s279, 1
          %s531 = scalar_lea.sflag [#allocation16], %s530
          %s532 = sand.u32 %s279, 1
          %s533 = smul.addr %s532, 128
          %s534 = scalar_lea.vmem [#allocation15], %s533
          %s536 = ssub.s32 2048, 2048
          %537 = vsyncadd %s531, %s536
          %s538 = smul.addr %s46, 32
          %s539 = smul.addr %s538, 64
          %s540 = scalar_lea.hbm %s9, %s539
          %s541 = sshll.u32 %s534, 4
          %s542 = int_to_ptr.vmem [resolvable:$true] %s541
          %547 = dma.hbm_to_vmem [thread:$0]  %s540, 2048, %s542, %s531, 64, 64, 4
        $region56: #{tpu_custom_call.1} parent=27 // pred_fallthru
          _
      $region28: #{tpu_custom_call.1} parent=5 // pred_fallthru
        _
      %p548 = scmp.le.s32.totalorder 1, %s38
      %p549 = scmp.lt.s32.totalorder %s38, 5
      %p550 = pnand %p548, %p549
      %p551 = pneg %p550
      // Predicated region
      $region57: #{tpu_custom_call.1} parent=5 // pred_check
        _
      $region58: #{tpu_custom_call.1} parent=5 // pred_check_branch
        %553 = sbr.rel (%p550) target = $region60
      $region59: #{tpu_custom_call.1} parent=5 // pred_region
        %s554 = ssub.s32 %s38, 1
        %s555 = sand.u32 %s63, 1
        %s556 = scalar_lea.sflag [#allocation4], %s555
        %s557 = sand.u32 %s63, 1
        %s558 = smul.addr %s557, 8
        %s559 = scalar_lea.vmem [#allocation3], %s558
        // Predicated region
        $region61: #{tpu_custom_call.1} parent=59 // pred_check
          %p560 = pneg %p76
        $region62: #{tpu_custom_call.1} parent=59 // pred_check_branch
          %562 = sbr.rel (%p560) target = $region64
        $region63: #{tpu_custom_call.1} parent=59 // pred_region
          %563 = dma.done %s556, 128
        $region64: #{tpu_custom_call.1} parent=59 // pred_fallthru
          _
        %s564 = sand.u32 %s43, 1
        %s565 = scalar_lea.sflag [#allocation7], %s564
        %s566 = sand.u32 %s89, 1
        %s567 = scalar_lea.vmem [#allocation6], %s566
        // Predicated region
        $region65: #{tpu_custom_call.1} parent=59 // pred_check
          %p568 = pneg %p102
        $region66: #{tpu_custom_call.1} parent=59 // pred_check_branch
          %570 = sbr.rel (%p568) target = $region68
        $region67: #{tpu_custom_call.1} parent=59 // pred_region
          %571 = dma.done %s565, 16
        $region68: #{tpu_custom_call.1} parent=59 // pred_fallthru
          _
        %s572 = sand.u32 %s43, 1
        %s573 = scalar_lea.sflag [#allocation7], %s572
        %s574 = sand.u32 %s115, 1
        %s575 = smul.addr %s574, 192
        %s576 = scalar_lea.vmem [#allocation8], %s575
        // Predicated region
        $region69: #{tpu_custom_call.1} parent=59 // pred_check
          %p577 = pneg %p128
        $region70: #{tpu_custom_call.1} parent=59 // pred_check_branch
          %579 = sbr.rel (%p577) target = $region72
        $region71: #{tpu_custom_call.1} parent=59 // pred_region
          %580 = dma.done %s573, 3072
        $region72: #{tpu_custom_call.1} parent=59 // pred_fallthru
          _
        // Predicated region
        $region73: #{tpu_custom_call.1} parent=59 // pred_check
          %p581 = pneg %p149
        $region74: #{tpu_custom_call.1} parent=59 // pred_check_branch
          %583 = sbr.rel (%p581) target = $region76
        $region75: #{tpu_custom_call.1} parent=59 // pred_region
          %584 = dma.done [#allocation10], 1024
        $region76: #{tpu_custom_call.1} parent=59 // pred_fallthru
          _
        // Predicated region
        $region77: #{tpu_custom_call.1} parent=59 // pred_check
          %p585 = pneg %p170
        $region78: #{tpu_custom_call.1} parent=59 // pred_check_branch
          %587 = sbr.rel (%p585) target = $region80
        $region79: #{tpu_custom_call.1} parent=59 // pred_region
          %588 = dma.done [#allocation10], 128
        $region80: #{tpu_custom_call.1} parent=59 // pred_fallthru
          _
        %s589 = sand.u32 %s43, 1
        %s590 = scalar_lea.sflag [#allocation13], %s589
        %s591 = sand.u32 %s204, 1
        %s592 = smul.addr %s591, 64
        %s593 = scalar_lea.vmem [#allocation12], %s592
        // Predicated region
        $region81: #{tpu_custom_call.1} parent=59 // pred_check
          %p594 = pneg %p217
        $region82: #{tpu_custom_call.1} parent=59 // pred_check_branch
          %596 = sbr.rel (%p594) target = $region84
        $region83: #{tpu_custom_call.1} parent=59 // pred_region
          %597 = dma.done %s590, 1024
        $region84: #{tpu_custom_call.1} parent=59 // pred_fallthru
          _
        %s598 = sand.u32 %s43, 1
        %s599 = scalar_lea.sflag [#allocation13], %s598
        %s600 = sand.u32 %s256, 1
        %s601 = smul.addr %s600, 256
        %s602 = scalar_lea.vmem [#allocation14], %s601
        // Predicated region
        $region85: #{tpu_custom_call.1} parent=59 // pred_check
          %p603 = pneg %p269
        $region86: #{tpu_custom_call.1} parent=59 // pred_check_branch
          %605 = sbr.rel (%p603) target = $region88
        $region87: #{tpu_custom_call.1} parent=59 // pred_region
          %606 = dma.done %s599, 4096
        $region88: #{tpu_custom_call.1} parent=59 // pred_fallthru
          _
        %s607 = sand.u32 %s282, 1
        %s608 = scalar_lea.sflag [#allocation16], %s607
        %s609 = sand.u32 %s282, 1
        %s610 = smul.addr %s609, 128
        %s611 = scalar_lea.vmem [#allocation15], %s610
        // Predicated region
        $region89: #{tpu_custom_call.1} parent=59 // pred_check
          %p612 = pneg %p295
        $region90: #{tpu_custom_call.1} parent=59 // pred_check_branch
          %614 = sbr.rel (%p612) target = $region92
        $region91: #{tpu_custom_call.1} parent=59 // pred_region
          %615 = dma.done %s608, 2048
        $region92: #{tpu_custom_call.1} parent=59 // pred_fallthru
          _
        %s616 = sand.u32 %s63, 1
        %s617 = scalar_lea.sflag [#allocation4], %s616
        %s618 = sand.u32 %s63, 1
        %s619 = smul.addr %s618, 8
        %s620 = scalar_lea.vmem [#allocation3], %s619
        %p621 = pneg %p76
        %p622 = pneg %p73
        %s623 = sand.u32 %s43, 1
        %s624 = scalar_lea.sflag [#allocation7], %s623
        %s625 = sand.u32 %s89, 1
        %s626 = scalar_lea.vmem [#allocation6], %s625
        %p627 = pneg %p102
        %p628 = pneg %p99
        %s629 = sand.u32 %s43, 1
        %s630 = scalar_lea.sflag [#allocation7], %s629
        %s631 = sand.u32 %s115, 1
        %s632 = smul.addr %s631, 192
        %s633 = scalar_lea.vmem [#allocation8], %s632
        %p634 = pneg %p128
        %p635 = pneg %p125
        %p636 = pneg %p149
        %p637 = pneg %p146
        %p638 = pneg %p170
        %p639 = pneg %p167
        %p640 = pneg %p191
        %p641 = pneg %p188
        %s642 = sand.u32 %s43, 1
        %s643 = scalar_lea.sflag [#allocation13], %s642
        %s644 = sand.u32 %s204, 1
        %s645 = smul.addr %s644, 64
        %s646 = scalar_lea.vmem [#allocation12], %s645
        %p647 = pneg %p217
        %p648 = pneg %p214
        %p649 = scmp.lt.s32.totalorder %s48, 1
        %s650 = scalar_select %p649, %s48, 1
        %s651 = scalar_lea.vmem %s7, %s650
        %p652 = pneg %p243
        %p653 = pneg %p240
        %s654 = sand.u32 %s43, 1
        %s655 = scalar_lea.sflag [#allocation13], %s654
        %s656 = sand.u32 %s256, 1
        %s657 = smul.addr %s656, 256
        %s658 = scalar_lea.vmem [#allocation14], %s657
        %p659 = pneg %p269
        %p660 = pneg %p266
        %s661 = sand.u32 %s282, 1
        %s662 = scalar_lea.sflag [#allocation16], %s661
        %s663 = sand.u32 %s282, 1
        %s664 = smul.addr %s663, 128
        %s665 = scalar_lea.vmem [#allocation15], %s664
        %p666 = pneg %p295
        %p667 = pneg %p292
        %p668 = pneg %p321
        %p669 = pneg %p318
        %s670 = sand.u32 %s308, 1
        %s671 = scalar_lea.sflag [#allocation5], %s670
        %s672 = sand.u32 %s308, 1
        %s673 = smul.addr %s672, 8
        %s674 = scalar_lea.vmem [#allocation17], %s673
        %p675 = pneg %p349
        %p676 = pneg %p346
        %s677 = sand.u32 %s43, 1
        %s678 = scalar_lea.sflag [#allocation19], %s677
        %s679 = sand.u32 %s336, 1
        %s680 = smul.addr %s679, 8
        %s681 = scalar_lea.vmem [#allocation18], %s680
        %p682 = pneg %p377
        %p683 = pneg %p374
        %s684 = sand.u32 %s43, 1
        %s685 = scalar_lea.sflag [#allocation19], %s684
        %s686 = sand.u32 %s364, 1
        %s687 = smul.addr %s686, 8
        %s688 = scalar_lea.vmem [#allocation20], %s687
        %p689 = scmp.lt.s32.totalorder %s48, 1
        %s690 = scalar_select %p689, %s48, 1
        %s691 = scalar_lea.vmem %s7, %s690
        %p693 = scmp.eq.s32.totalorder %s48, 0
        // Predicated region
        $region93: #{tpu_custom_call.1} parent=59 // pred_check
          %p694 = pneg %p693
        $region94: #{tpu_custom_call.1} parent=59 // pred_check_branch
          %696 = sbr.rel (%p694) target = $region96
        $region95: #{tpu_custom_call.1} parent=59 // pred_region
          %v697 = vld [vmem:[%s559] sm:$0xff]
          %698 = vst [vmem:[#allocation2] sm:$0xff] %v697
        $region96: #{tpu_custom_call.1} parent=59 // pred_fallthru
          _
        %v699 = vld [vmem:[#allocation2] sm:$0xff]
        %v700 = vld [vmem:[%s567] sm:$0x1]
        %v701 = vmul.f32 %v699, %v699
        %702 = vadd.xlane.f32.xlu0 %v701
        %v703 = vpop.xlane.xlu0 %702
        %v704 = vrcp.pop 128.0
        %v705 = vmul.f32 %v703, %v704
        %v706 = vadd.f32 %v705, 1e-06
        %v707 = vrsqrt.pop %v706
        %v708 = vmul.f32 %v699, %v707
        %v710 = vlaneseq
        %v711 = vshrl.u32 %v710, 7
        %v712 = vsub.s32 0, %v711
        %v713 = vrot.slane %v700, %v712
        %v715 = vmul.f32 %v708, %v713
        %v716 = vpack.c.bf16 %v715, %v715
        %v717 = vld [vmem:[%s576] sm:$0xff]
        %v718 = vld [vmem:[%s576 + $0x8] sm:$0xf]
        %v719 = vld [vmem:[%s576 + $0xc] sm:$0xff]
        %v720 = vld [vmem:[%s576 + $0x14] sm:$0xf]
        %v721 = vld [vmem:[%s576 + $0x18] sm:$0xff]
        %v722 = vld [vmem:[%s576 + $0x20] sm:$0xf]
        %v723 = vld [vmem:[%s576 + $0x24] sm:$0xff]
        %v724 = vld [vmem:[%s576 + $0x2c] sm:$0xf]
        %v725 = vld [vmem:[%s576 + $0x30] sm:$0xff]
        %v726 = vld [vmem:[%s576 + $0x38] sm:$0xf]
        %v727 = vld [vmem:[%s576 + $0x3c] sm:$0xff]
        %v728 = vld [vmem:[%s576 + $0x44] sm:$0xf]
        %v729 = vld [vmem:[%s576 + $0x48] sm:$0xff]
        %v730 = vld [vmem:[%s576 + $0x50] sm:$0xf]
        %v731 = vld [vmem:[%s576 + $0x54] sm:$0xff]
        %v732 = vld [vmem:[%s576 + $0x5c] sm:$0xf]
        %v733 = vld [vmem:[%s576 + $0x60] sm:$0xff]
        %v734 = vld [vmem:[%s576 + $0x68] sm:$0xf]
        %v735 = vld [vmem:[%s576 + $0x6c] sm:$0xff]
        %v736 = vld [vmem:[%s576 + $0x74] sm:$0xf]
        %v737 = vld [vmem:[%s576 + $0x78] sm:$0xff]
        %v738 = vld [vmem:[%s576 + $0x80] sm:$0xf]
        %v739 = vld [vmem:[%s576 + $0x84] sm:$0xff]
        %v740 = vld [vmem:[%s576 + $0x8c] sm:$0xf]
        %v741 = vld [vmem:[%s576 + $0x90] sm:$0xff]
        %v742 = vld [vmem:[%s576 + $0x98] sm:$0xf]
        %v743 = vld [vmem:[%s576 + $0x9c] sm:$0xff]
        %v744 = vld [vmem:[%s576 + $0xa4] sm:$0xf]
        %v745 = vld [vmem:[%s576 + $0xa8] sm:$0xff]
        %v746 = vld [vmem:[%s576 + $0xb0] sm:$0xf]
        %v747 = vld [vmem:[%s576 + $0xb4] sm:$0xff]
        %v748 = vld [vmem:[%s576 + $0xbc] sm:$0xf]
        %v781 = vunpack.c.l.b16 %v717
        %v782 = vunpack.c.h.b16 %v717
        %v783 = vunpack.c.l.b16 %v718
        %v784 = vunpack.c.l.b16 %v719
        %v785 = vunpack.c.h.b16 %v719
        %v786 = vunpack.c.l.b16 %v720
        %v787 = vunpack.c.l.b16 %v721
        %v788 = vunpack.c.h.b16 %v721
        %v789 = vunpack.c.l.b16 %v722
        %v790 = vunpack.c.l.b16 %v723
        %v791 = vunpack.c.h.b16 %v723
        %v792 = vunpack.c.l.b16 %v724
        %v793 = vunpack.c.l.b16 %v725
        %v794 = vunpack.c.h.b16 %v725
        %v795 = vunpack.c.l.b16 %v726
        %v796 = vunpack.c.l.b16 %v727
        %v797 = vunpack.c.h.b16 %v727
        %v798 = vunpack.c.l.b16 %v728
        %v799 = vunpack.c.l.b16 %v729
        %v800 = vunpack.c.h.b16 %v729
        %v801 = vunpack.c.l.b16 %v730
        %v802 = vunpack.c.l.b16 %v731
        %v803 = vunpack.c.h.b16 %v731
        %v804 = vunpack.c.l.b16 %v732
        %v805 = vunpack.c.l.b16 %v733
        %v806 = vunpack.c.h.b16 %v733
        %v807 = vunpack.c.l.b16 %v734
        %v808 = vunpack.c.l.b16 %v735
        %v809 = vunpack.c.h.b16 %v735
        %v810 = vunpack.c.l.b16 %v736
        %v811 = vunpack.c.l.b16 %v737
        %v812 = vunpack.c.h.b16 %v737
        %v813 = vunpack.c.l.b16 %v738
        %v814 = vunpack.c.l.b16 %v739
        %v815 = vunpack.c.h.b16 %v739
        %v816 = vunpack.c.l.b16 %v740
        %v817 = vunpack.c.l.b16 %v741
        %v818 = vunpack.c.h.b16 %v741
        %v819 = vunpack.c.l.b16 %v742
        %v820 = vunpack.c.l.b16 %v743
        %v821 = vunpack.c.h.b16 %v743
        %v822 = vunpack.c.l.b16 %v744
        %v823 = vunpack.c.l.b16 %v745
        %v824 = vunpack.c.h.b16 %v745
        %v825 = vunpack.c.l.b16 %v746
        %v826 = vunpack.c.l.b16 %v747
        %v827 = vunpack.c.h.b16 %v747
        %v828 = vunpack.c.l.b16 %v748
        %v829 = vpack.c.b16 %v784, %v781
        %v830 = vpack.c.b16 %v785, %v782
        %v831 = vpack.c.b16 %v786, %v783
        %v832 = vpack.c.b16 %v790, %v787
        %v833 = vpack.c.b16 %v791, %v788
        %v834 = vpack.c.b16 %v792, %v789
        %v835 = vpack.c.b16 %v796, %v793
        %v836 = vpack.c.b16 %v797, %v794
        %v837 = vpack.c.b16 %v798, %v795
        %v838 = vpack.c.b16 %v802, %v799
        %v839 = vpack.c.b16 %v803, %v800
        %v840 = vpack.c.b16 %v804, %v801
        %v841 = vpack.c.b16 %v808, %v805
        %v842 = vpack.c.b16 %v809, %v806
        %v843 = vpack.c.b16 %v810, %v807
        %v844 = vpack.c.b16 %v814, %v811
        %v845 = vpack.c.b16 %v815, %v812
        %v846 = vpack.c.b16 %v816, %v813
        %v847 = vpack.c.b16 %v820, %v817
        %v848 = vpack.c.b16 %v821, %v818
        %v849 = vpack.c.b16 %v822, %v819
        %v850 = vpack.c.b16 %v826, %v823
        %v851 = vpack.c.b16 %v827, %v824
        %v852 = vpack.c.b16 %v828, %v825
        %877 = vmatprep.subr.bf16.mxu0 %v851
        %878 = vmatpush1.bf16.msra.mxu0 %v850
        %879 = vmatprep.subr.bf16.mxu0 %v848
        %880 = vmatpush1.bf16.msra.mxu0 %v847
        %881 = vmatprep.subr.bf16.mxu0 %v845
        %882 = vmatpush1.bf16.msra.mxu0 %v844
        %883 = vmatprep.subr.bf16.mxu0 %v842
        %884 = vmatpush1.bf16.msra.mxu0 %v841
        %885 = vmatprep.subr.bf16.mxu0 %v839
        %886 = vmatpush1.bf16.msra.mxu0 %v838
        %887 = vmatprep.subr.bf16.mxu0 %v836
        %888 = vmatpush1.bf16.msra.mxu0 %v835
        %889 = vmatprep.subr.bf16.mxu0 %v833
        %890 = vmatpush1.bf16.msra.mxu0 %v832
        %891 = vmatprep.subr.bf16.mxu0 %v830
        %892 = vmatpush1.bf16.msra.mxu0 %v829
        %893 = vmatprep.subr.bf16.mxu0 0
        %894 = vmatpush2.bf16.msra.mxu0 0
        %895 = vmatprep.subr.bf16.mxu0 0
        %896 = vmatpush2.bf16.msra.mxu0 0
        %897 = vmatprep.subr.bf16.mxu0 0
        %898 = vmatpush2.bf16.msra.mxu0 0
        %899 = vmatprep.subr.bf16.mxu0 0
        %900 = vmatpush2.bf16.msra.mxu0 0
        %901 = vmatprep.subr.bf16.mxu0 0
        %902 = vmatpush2.bf16.msra.mxu0 0
        %903 = vmatprep.subr.bf16.mxu0 0
        %904 = vmatpush2.bf16.msra.mxu0 0
        %905 = vmatprep.subr.bf16.mxu0 0
        %906 = vmatpush2.bf16.msra.mxu0 0
        %907 = vmatprep.subr.bf16.mxu0 0
        %908 = vmatpush2.bf16.msra.mxu0 0
        %909 = vmatprep.mubr.bf16.mxu0 0
        %910 = vmatmul.mubr.bf16.gmra.mxu0 %v716
        %v911 = vpop.f32.mrf.mxu0
        %v912 = vadd.f32 0.0, %v911
        %v913 = vpop.f32.mrf.mxu0
        %v914 = vadd.f32 0.0, %v913
        %v915 = vpop.f32.mrf.mxu0
        %v916 = vpop.f32.mrf.mxu0
        %917 = vdwg.mxu0
        %918 = vmatprep.subr.bf16.mxu0 0
        %919 = vmatpush1.bf16.msra.mxu0 %v852
        %920 = vmatprep.subr.bf16.mxu0 0
        %921 = vmatpush1.bf16.msra.mxu0 %v849
        %922 = vmatprep.subr.bf16.mxu0 0
        %923 = vmatpush1.bf16.msra.mxu0 %v846
        %924 = vmatprep.subr.bf16.mxu0 0
        %925 = vmatpush1.bf16.msra.mxu0 %v843
        %926 = vmatprep.subr.bf16.mxu0 0
        %927 = vmatpush1.bf16.msra.mxu0 %v840
        %928 = vmatprep.subr.bf16.mxu0 0
        %929 = vmatpush1.bf16.msra.mxu0 %v837
        %930 = vmatprep.subr.bf16.mxu0 0
        %931 = vmatpush1.bf16.msra.mxu0 %v834
        %932 = vmatprep.subr.bf16.mxu0 0
        %933 = vmatpush1.bf16.msra.mxu0 %v831
        %934 = vmatprep.subr.bf16.mxu0 0
        %935 = vmatpush2.bf16.msra.mxu0 0
        %936 = vmatprep.subr.bf16.mxu0 0
        %937 = vmatpush2.bf16.msra.mxu0 0
        %938 = vmatprep.subr.bf16.mxu0 0
        %939 = vmatpush2.bf16.msra.mxu0 0
        %940 = vmatprep.subr.bf16.mxu0 0
        %941 = vmatpush2.bf16.msra.mxu0 0
        %942 = vmatprep.subr.bf16.mxu0 0
        %943 = vmatpush2.bf16.msra.mxu0 0
        %944 = vmatprep.subr.bf16.mxu0 0
        %945 = vmatpush2.bf16.msra.mxu0 0
        %946 = vmatprep.subr.bf16.mxu0 0
        %947 = vmatpush2.bf16.msra.mxu0 0
        %948 = vmatprep.subr.bf16.mxu0 0
        %949 = vmatpush2.bf16.msra.mxu0 0
        %950 = vmatprep.mubr.bf16.mxu0 0
        %951 = vmatmul.mubr.bf16.gmra.mxu0 %v716
        %v952 = vpop.f32.mrf.mxu0
        %v953 = vadd.f32 0.0, %v952
        %v954 = vpop.f32.mrf.mxu0
        %v955 = vpop.f32.mrf.mxu0
        %v956 = vpop.f32.mrf.mxu0
        %957 = vdwg.mxu0
        %v958 = vld [vmem:[#allocation11] sm:$0xff]
        %v959 = vld [vmem:[%s5] sm:$0xff]
        %v960 = vld [vmem:[#allocation9] sm:$0xf]
        %v961 = vld [vmem:[#allocation9 + $0x4] sm:$0xf]
        %v962 = vld [vmem:[#allocation9 + $0x8] sm:$0xf]
        %v963 = vld [vmem:[#allocation9 + $0xc] sm:$0xf]
        %v964 = vld [vmem:[#allocation9 + $0x10] sm:$0xf]
        %v965 = vld [vmem:[#allocation9 + $0x14] sm:$0xf]
        %v966 = vld [vmem:[#allocation9 + $0x18] sm:$0xf]
        %v967 = vld [vmem:[#allocation9 + $0x1c] sm:$0xf]
        %v968 = vld [vmem:[#allocation9 + $0x20] sm:$0xf]
        %v969 = vld [vmem:[#allocation9 + $0x24] sm:$0xf]
        %v970 = vld [vmem:[#allocation9 + $0x28] sm:$0xf]
        %v971 = vld [vmem:[#allocation9 + $0x2c] sm:$0xf]
        %v972 = vld [vmem:[#allocation9 + $0x30] sm:$0xf]
        %v973 = vld [vmem:[#allocation9 + $0x34] sm:$0xf]
        %v974 = vld [vmem:[#allocation9 + $0x38] sm:$0xf]
        %v975 = vld [vmem:[#allocation9 + $0x3c] sm:$0xf]
        %v976 = vmul.f32 %v912, %v958
        %v977 = vpack.c.bf16 %v912, %v912
        %v994 = vunpack.c.l.b16 %v960
        %v995 = vunpack.c.l.b16 %v961
        %v996 = vunpack.c.l.b16 %v962
        %v997 = vunpack.c.l.b16 %v963
        %v998 = vunpack.c.l.b16 %v964
        %v999 = vunpack.c.l.b16 %v965
        %v1000 = vunpack.c.l.b16 %v966
        %v1001 = vunpack.c.l.b16 %v967
        %v1002 = vunpack.c.l.b16 %v968
        %v1003 = vunpack.c.l.b16 %v969
        %v1004 = vunpack.c.l.b16 %v970
        %v1005 = vunpack.c.l.b16 %v971
        %v1006 = vunpack.c.l.b16 %v972
        %v1007 = vunpack.c.l.b16 %v973
        %v1008 = vunpack.c.l.b16 %v974
        %v1009 = vunpack.c.l.b16 %v975
        %v1010 = vpack.c.b16 %v995, %v994
        %v1011 = vpack.c.b16 %v997, %v996
        %v1012 = vpack.c.b16 %v999, %v998
        %v1013 = vpack.c.b16 %v1001, %v1000
        %v1014 = vpack.c.b16 %v1003, %v1002
        %v1015 = vpack.c.b16 %v1005, %v1004
        %v1016 = vpack.c.b16 %v1007, %v1006
        %v1017 = vpack.c.b16 %v1009, %v1008
        %1026 = vmatprep.subr.bf16.mxu0 0
        %1027 = vmatpush1.bf16.msra.mxu0 %v1017
        %1028 = vmatprep.subr.bf16.mxu0 0
        %1029 = vmatpush1.bf16.msra.mxu0 %v1016
        %1030 = vmatprep.subr.bf16.mxu0 0
        %1031 = vmatpush1.bf16.msra.mxu0 %v1015
        %1032 = vmatprep.subr.bf16.mxu0 0
        %1033 = vmatpush1.bf16.msra.mxu0 %v1014
        %1034 = vmatprep.subr.bf16.mxu0 0
        %1035 = vmatpush1.bf16.msra.mxu0 %v1013
        %1036 = vmatprep.subr.bf16.mxu0 0
        %1037 = vmatpush1.bf16.msra.mxu0 %v1012
        %1038 = vmatprep.subr.bf16.mxu0 0
        %1039 = vmatpush1.bf16.msra.mxu0 %v1011
        %1040 = vmatprep.subr.bf16.mxu0 0
        %1041 = vmatpush1.bf16.msra.mxu0 %v1010
        %1042 = vmatprep.subr.bf16.mxu0 0
        %1043 = vmatpush2.bf16.msra.mxu0 0
        %1044 = vmatprep.subr.bf16.mxu0 0
        %1045 = vmatpush2.bf16.msra.mxu0 0
        %1046 = vmatprep.subr.bf16.mxu0 0
        %1047 = vmatpush2.bf16.msra.mxu0 0
        %1048 = vmatprep.subr.bf16.mxu0 0
        %1049 = vmatpush2.bf16.msra.mxu0 0
        %1050 = vmatprep.subr.bf16.mxu0 0
        %1051 = vmatpush2.bf16.msra.mxu0 0
        %1052 = vmatprep.subr.bf16.mxu0 0
        %1053 = vmatpush2.bf16.msra.mxu0 0
        %1054 = vmatprep.subr.bf16.mxu0 0
        %1055 = vmatpush2.bf16.msra.mxu0 0
        %1056 = vmatprep.subr.bf16.mxu0 0
        %1057 = vmatpush2.bf16.msra.mxu0 0
        %1058 = vmatprep.mubr.bf16.mxu0 0
        %1059 = vmatmul.mubr.bf16.gmra.mxu0 %v977
        %v1060 = vpop.f32.mrf.mxu0
        %v1061 = vadd.f32 0.0, %v1060
        %v1062 = vpop.f32.mrf.mxu0
        %v1063 = vpop.f32.mrf.mxu0
        %v1064 = vpop.f32.mrf.mxu0
        %1065 = vdwg.mxu0
        %v1066 = vmul.f32 %v1061, %v959
        %v1067 = vadd.f32 %v976, %v1066
        %v1068 = vmul.f32 %v914, %v958
        %v1069 = vpack.c.bf16 %v914, %v914
        %1070 = vmatprep.subr.bf16.mxu0 0
        %1071 = vmatpush1.bf16.msra.mxu0 %v1017
        %1072 = vmatprep.subr.bf16.mxu0 0
        %1073 = vmatpush1.bf16.msra.mxu0 %v1016
        %1074 = vmatprep.subr.bf16.mxu0 0
        %1075 = vmatpush1.bf16.msra.mxu0 %v1015
        %1076 = vmatprep.subr.bf16.mxu0 0
        %1077 = vmatpush1.bf16.msra.mxu0 %v1014
        %1078 = vmatprep.subr.bf16.mxu0 0
        %1079 = vmatpush1.bf16.msra.mxu0 %v1013
        %1080 = vmatprep.subr.bf16.mxu0 0
        %1081 = vmatpush1.bf16.msra.mxu0 %v1012
        %1082 = vmatprep.subr.bf16.mxu0 0
        %1083 = vmatpush1.bf16.msra.mxu0 %v1011
        %1084 = vmatprep.subr.bf16.mxu0 0
        %1085 = vmatpush1.bf16.msra.mxu0 %v1010
        %1086 = vmatprep.subr.bf16.mxu0 0
        %1087 = vmatpush2.bf16.msra.mxu0 0
        %1088 = vmatprep.subr.bf16.mxu0 0
        %1089 = vmatpush2.bf16.msra.mxu0 0
        %1090 = vmatprep.subr.bf16.mxu0 0
        %1091 = vmatpush2.bf16.msra.mxu0 0
        %1092 = vmatprep.subr.bf16.mxu0 0
        %1093 = vmatpush2.bf16.msra.mxu0 0
        %1094 = vmatprep.subr.bf16.mxu0 0
        %1095 = vmatpush2.bf16.msra.mxu0 0
        %1096 = vmatprep.subr.bf16.mxu0 0
        %1097 = vmatpush2.bf16.msra.mxu0 0
        %1098 = vmatprep.subr.bf16.mxu0 0
        %1099 = vmatpush2.bf16.msra.mxu0 0
        %1100 = vmatprep.subr.bf16.mxu0 0
        %1101 = vmatpush2.bf16.msra.mxu0 0
        %1102 = vmatprep.mubr.bf16.mxu0 0
        %1103 = vmatmul.mubr.bf16.gmra.mxu0 %v1069
        %v1104 = vpop.f32.mrf.mxu0
        %v1105 = vadd.f32 0.0, %v1104
        %v1106 = vpop.f32.mrf.mxu0
        %v1107 = vpop.f32.mrf.mxu0
        %v1108 = vpop.f32.mrf.mxu0
        %1109 = vdwg.mxu0
        %v1110 = vmul.f32 %v1105, %v959
        %v1111 = vadd.f32 %v1068, %v1110
        %1112 = vst [vmem:[%s681] sm:$0xff] %v1111
        %1113 = vst [vmem:[%s688] sm:$0xff] %v953
        %v1114 = vlaneseq
        %v1115 = vshrl.u32 %v1114, 7
        %v1116 = vlaneseq
        %v1117 = vand.u32 %v1116, 127
        %vm1118 = vcmp.le.s32.totalorder %v1117, %v1115
        %v1119 = vpack.c.bf16 %v1067, %v1067
        %v1120 = vpack.c.bf16 %v1111, %v1111
        %v1121 = vpack.c.bf16 %v953, %v953
        %vm1122 = vcmask 261120
        %v1124 = vsel %vm1122, %v1119, 0
        %v1127 = vsel %vm1122, %v1120, 0
        %1129 = vmatprep.subr.bf16.mxu0 0
        %1130 = vmatpush1.bf16.xpose.msra.mxu0 0
        %1131 = vmatprep.subr.bf16.mxu0 0
        %1132 = vmatpush1.bf16.xpose.msra.mxu0 0
        %1133 = vmatprep.subr.bf16.mxu0 0
        %1134 = vmatpush1.bf16.xpose.msra.mxu0 0
        %1135 = vmatprep.subr.bf16.mxu0 0
        %1136 = vmatpush1.bf16.xpose.msra.mxu0 0
        %1137 = vmatprep.subr.bf16.mxu0 0
        %1138 = vmatpush1.bf16.xpose.msra.mxu0 0
        %1139 = vmatprep.subr.bf16.mxu0 0
        %1140 = vmatpush1.bf16.xpose.msra.mxu0 0
        %1141 = vmatprep.subr.bf16.mxu0 0
        %1142 = vmatpush1.bf16.xpose.msra.mxu0 0
        %1143 = vmatprep.subr.bf16.mxu0 0
        %1144 = vmatpush1.bf16.xpose.msra.mxu0 %v1127
        %1145 = vmatprep.subr.bf16.mxu0 0
        %1146 = vmatpush2.bf16.xpose.msra.mxu0 0
        %1147 = vmatprep.subr.bf16.mxu0 0
        %1148 = vmatpush2.bf16.xpose.msra.mxu0 0
        %1149 = vmatprep.subr.bf16.mxu0 0
        %1150 = vmatpush2.bf16.xpose.msra.mxu0 0
        %1151 = vmatprep.subr.bf16.mxu0 0
        %1152 = vmatpush2.bf16.xpose.msra.mxu0 0
        %1153 = vmatprep.subr.bf16.mxu0 0
        %1154 = vmatpush2.bf16.xpose.msra.mxu0 0
        %1155 = vmatprep.subr.bf16.mxu0 0
        %1156 = vmatpush2.bf16.xpose.msra.mxu0 0
        %1157 = vmatprep.subr.bf16.mxu0 0
        %1158 = vmatpush2.bf16.xpose.msra.mxu0 0
        %1159 = vmatprep.subr.bf16.mxu0 0
        %1160 = vmatpush2.bf16.xpose.msra.mxu0 0
        %1161 = vmatprep.mubr.bf16.mxu0 0
        %1162 = vmatmul.mubr.bf16.gmra.mxu0 %v1124
        %v1163 = vpop.f32.mrf.mxu0
        %v1164 = vadd.f32 0.0, %v1163
        %v1165 = vpop.f32.mrf.mxu0
        %v1166 = vpop.f32.mrf.mxu0
        %v1167 = vpop.f32.mrf.mxu0
        %1168 = vdwg.mxu0
        %v1169 = vmul.f32 %v1164, 0.17677669
        %v1170 = vsel %vm1118, %v1169, -1e+30
        %vm1171 = vcmask 64512
        %v1172 = vsel %vm1171, %v1170, -inf
        %1173 = vmax.xlane.f32.xlu0 %v1172
        %v1174 = vpop.xlane.xlu0 %1173
        %v1175 = vsub.f32 %v1170, %v1174
        %v1176 = vmul.f32 %v1175, 1.442695
        %v1177 = vpow.pop %v1176
        %v1178 = vsel %vm1171, %v1177, 0.0
        %1179 = vadd.xlane.f32.xlu0 %v1178
        %v1180 = vpop.xlane.xlu0 %1179
        %v1181 = vrcp.pop %v1180
        %v1182 = vpack.c.bf16 %v1177, %v1177
        %v1184 = vsel %vm1171, %v1182, 0
        %vm1186 = vcmask 1043456
        %v1188 = vsel %vm1186, %v1121, 0
        %1190 = vmatprep.subr.bf16.mxu0 0
        %1191 = vmatpush1.bf16.msra.mxu0 0
        %1192 = vmatprep.subr.bf16.mxu0 0
        %1193 = vmatpush1.bf16.msra.mxu0 0
        %1194 = vmatprep.subr.bf16.mxu0 0
        %1195 = vmatpush1.bf16.msra.mxu0 0
        %1196 = vmatprep.subr.bf16.mxu0 0
        %1197 = vmatpush1.bf16.msra.mxu0 0
        %1198 = vmatprep.subr.bf16.mxu0 0
        %1199 = vmatpush1.bf16.msra.mxu0 0
        %1200 = vmatprep.subr.bf16.mxu0 0
        %1201 = vmatpush1.bf16.msra.mxu0 0
        %1202 = vmatprep.subr.bf16.mxu0 0
        %1203 = vmatpush1.bf16.msra.mxu0 0
        %1204 = vmatprep.subr.bf16.mxu0 0
        %1205 = vmatpush1.bf16.msra.mxu0 %v1188
        %1206 = vmatprep.subr.bf16.mxu0 0
        %1207 = vmatpush2.bf16.msra.mxu0 0
        %1208 = vmatprep.subr.bf16.mxu0 0
        %1209 = vmatpush2.bf16.msra.mxu0 0
        %1210 = vmatprep.subr.bf16.mxu0 0
        %1211 = vmatpush2.bf16.msra.mxu0 0
        %1212 = vmatprep.subr.bf16.mxu0 0
        %1213 = vmatpush2.bf16.msra.mxu0 0
        %1214 = vmatprep.subr.bf16.mxu0 0
        %1215 = vmatpush2.bf16.msra.mxu0 0
        %1216 = vmatprep.subr.bf16.mxu0 0
        %1217 = vmatpush2.bf16.msra.mxu0 0
        %1218 = vmatprep.subr.bf16.mxu0 0
        %1219 = vmatpush2.bf16.msra.mxu0 0
        %1220 = vmatprep.subr.bf16.mxu0 0
        %1221 = vmatpush2.bf16.msra.mxu0 0
        %1222 = vmatprep.mubr.bf16.mxu0 0
        %1223 = vmatmul.mubr.bf16.gmra.mxu0 %v1184
        %v1224 = vpop.f32.mrf.mxu0
        %v1225 = vadd.f32 0.0, %v1224
        %v1226 = vpop.f32.mrf.mxu0
        %v1227 = vpop.f32.mrf.mxu0
        %v1228 = vpop.f32.mrf.mxu0
        %1229 = vdwg.mxu0
        %v1230 = vmul.f32 %v1225, %v1181
        %1232 = vrot.lane.b32.xlu0 %v1119, 96
        %v1233 = vpop.permute.xlu0 %1232
        %1235 = vrot.lane.b32.xlu0 %v1120, 96
        %v1236 = vpop.permute.xlu0 %1235
        %v1238 = vsel %vm1122, %v1233, 0
        %v1241 = vsel %vm1122, %v1236, 0
        %1243 = vmatprep.subr.bf16.mxu0 0
        %1244 = vmatpush1.bf16.xpose.msra.mxu0 0
        %1245 = vmatprep.subr.bf16.mxu0 0
        %1246 = vmatpush1.bf16.xpose.msra.mxu0 0
        %1247 = vmatprep.subr.bf16.mxu0 0
        %1248 = vmatpush1.bf16.xpose.msra.mxu0 0
        %1249 = vmatprep.subr.bf16.mxu0 0
        %1250 = vmatpush1.bf16.xpose.msra.mxu0 0
        %1251 = vmatprep.subr.bf16.mxu0 0
        %1252 = vmatpush1.bf16.xpose.msra.mxu0 0
        %1253 = vmatprep.subr.bf16.mxu0 0
        %1254 = vmatpush1.bf16.xpose.msra.mxu0 0
        %1255 = vmatprep.subr.bf16.mxu0 0
        %1256 = vmatpush1.bf16.xpose.msra.mxu0 0
        %1257 = vmatprep.subr.bf16.mxu0 0
        %1258 = vmatpush1.bf16.xpose.msra.mxu0 %v1241
        %1259 = vmatprep.subr.bf16.mxu0 0
        %1260 = vmatpush2.bf16.xpose.msra.mxu0 0
        %1261 = vmatprep.subr.bf16.mxu0 0
        %1262 = vmatpush2.bf16.xpose.msra.mxu0 0
        %1263 = vmatprep.subr.bf16.mxu0 0
        %1264 = vmatpush2.bf16.xpose.msra.mxu0 0
        %1265 = vmatprep.subr.bf16.mxu0 0
        %1266 = vmatpush2.bf16.xpose.msra.mxu0 0
        %1267 = vmatprep.subr.bf16.mxu0 0
        %1268 = vmatpush2.bf16.xpose.msra.mxu0 0
        %1269 = vmatprep.subr.bf16.mxu0 0
        %1270 = vmatpush2.bf16.xpose.msra.mxu0 0
        %1271 = vmatprep.subr.bf16.mxu0 0
        %1272 = vmatpush2.bf16.xpose.msra.mxu0 0
        %1273 = vmatprep.subr.bf16.mxu0 0
        %1274 = vmatpush2.bf16.xpose.msra.mxu0 0
        %1275 = vmatprep.mubr.bf16.mxu0 0
        %1276 = vmatmul.mubr.bf16.gmra.mxu0 %v1238
        %v1277 = vpop.f32.mrf.mxu0
        %v1278 = vadd.f32 0.0, %v1277
        %v1279 = vpop.f32.mrf.mxu0
        %v1280 = vpop.f32.mrf.mxu0
        %v1281 = vpop.f32.mrf.mxu0
        %1282 = vdwg.mxu0
        %v1283 = vmul.f32 %v1278, 0.17677669
        %v1284 = vsel %vm1118, %v1283, -1e+30
        %v1285 = vsel %vm1171, %v1284, -inf
        %1286 = vmax.xlane.f32.xlu0 %v1285
        %v1287 = vpop.xlane.xlu0 %1286
        %v1288 = vsub.f32 %v1284, %v1287
        %v1289 = vmul.f32 %v1288, 1.442695
        %v1290 = vpow.pop %v1289
        %v1291 = vsel %vm1171, %v1290, 0.0
        %1292 = vadd.xlane.f32.xlu0 %v1291
        %v1293 = vpop.xlane.xlu0 %1292
        %v1294 = vrcp.pop %v1293
        %v1295 = vpack.c.bf16 %v1290, %v1290
        %1297 = vrot.lane.b32.xlu0 %v1121, 96
        %v1298 = vpop.permute.xlu0 %1297
        %v1300 = vsel %vm1171, %v1295, 0
        %v1303 = vsel %vm1186, %v1298, 0
        %1305 = vmatprep.subr.bf16.mxu0 0
        %1306 = vmatpush1.bf16.msra.mxu0 0
        %1307 = vmatprep.subr.bf16.mxu0 0
        %1308 = vmatpush1.bf16.msra.mxu0 0
        %1309 = vmatprep.subr.bf16.mxu0 0
        %1310 = vmatpush1.bf16.msra.mxu0 0
        %1311 = vmatprep.subr.bf16.mxu0 0
        %1312 = vmatpush1.bf16.msra.mxu0 0
        %1313 = vmatprep.subr.bf16.mxu0 0
        %1314 = vmatpush1.bf16.msra.mxu0 0
        %1315 = vmatprep.subr.bf16.mxu0 0
        %1316 = vmatpush1.bf16.msra.mxu0 0
        %1317 = vmatprep.subr.bf16.mxu0 0
        %1318 = vmatpush1.bf16.msra.mxu0 0
        %1319 = vmatprep.subr.bf16.mxu0 0
        %1320 = vmatpush1.bf16.msra.mxu0 %v1303
        %1321 = vmatprep.subr.bf16.mxu0 0
        %1322 = vmatpush2.bf16.msra.mxu0 0
        %1323 = vmatprep.subr.bf16.mxu0 0
        %1324 = vmatpush2.bf16.msra.mxu0 0
        %1325 = vmatprep.subr.bf16.mxu0 0
        %1326 = vmatpush2.bf16.msra.mxu0 0
        %1327 = vmatprep.subr.bf16.mxu0 0
        %1328 = vmatpush2.bf16.msra.mxu0 0
        %1329 = vmatprep.subr.bf16.mxu0 0
        %1330 = vmatpush2.bf16.msra.mxu0 0
        %1331 = vmatprep.subr.bf16.mxu0 0
        %1332 = vmatpush2.bf16.msra.mxu0 0
        %1333 = vmatprep.subr.bf16.mxu0 0
        %1334 = vmatpush2.bf16.msra.mxu0 0
        %1335 = vmatprep.subr.bf16.mxu0 0
        %1336 = vmatpush2.bf16.msra.mxu0 0
        %1337 = vmatprep.mubr.bf16.mxu0 0
        %1338 = vmatmul.mubr.bf16.gmra.mxu0 %v1300
        %v1339 = vpop.f32.mrf.mxu0
        %v1340 = vadd.f32 0.0, %v1339
        %v1341 = vpop.f32.mrf.mxu0
        %v1342 = vpop.f32.mrf.mxu0
        %v1343 = vpop.f32.mrf.mxu0
        %1344 = vdwg.mxu0
        %v1345 = vmul.f32 %v1340, %v1294
        %1346 = vrot.lane.b32.xlu0 %v1119, 64
        %v1347 = vpop.permute.xlu0 %1346
        %1348 = vrot.lane.b32.xlu0 %v1120, 64
        %v1349 = vpop.permute.xlu0 %1348
        %v1351 = vsel %vm1122, %v1347, 0
        %v1354 = vsel %vm1122, %v1349, 0
        %1356 = vmatprep.subr.bf16.mxu0 0
        %1357 = vmatpush1.bf16.xpose.msra.mxu0 0
        %1358 = vmatprep.subr.bf16.mxu0 0
        %1359 = vmatpush1.bf16.xpose.msra.mxu0 0
        %1360 = vmatprep.subr.bf16.mxu0 0
        %1361 = vmatpush1.bf16.xpose.msra.mxu0 0
        %1362 = vmatprep.subr.bf16.mxu0 0
        %1363 = vmatpush1.bf16.xpose.msra.mxu0 0
        %1364 = vmatprep.subr.bf16.mxu0 0
        %1365 = vmatpush1.bf16.xpose.msra.mxu0 0
        %1366 = vmatprep.subr.bf16.mxu0 0
        %1367 = vmatpush1.bf16.xpose.msra.mxu0 0
        %1368 = vmatprep.subr.bf16.mxu0 0
        %1369 = vmatpush1.bf16.xpose.msra.mxu0 0
        %1370 = vmatprep.subr.bf16.mxu0 0
        %1371 = vmatpush1.bf16.xpose.msra.mxu0 %v1354
        %1372 = vmatprep.subr.bf16.mxu0 0
        %1373 = vmatpush2.bf16.xpose.msra.mxu0 0
        %1374 = vmatprep.subr.bf16.mxu0 0
        %1375 = vmatpush2.bf16.xpose.msra.mxu0 0
        %1376 = vmatprep.subr.bf16.mxu0 0
        %1377 = vmatpush2.bf16.xpose.msra.mxu0 0
        %1378 = vmatprep.subr.bf16.mxu0 0
        %1379 = vmatpush2.bf16.xpose.msra.mxu0 0
        %1380 = vmatprep.subr.bf16.mxu0 0
        %1381 = vmatpush2.bf16.xpose.msra.mxu0 0
        %1382 = vmatprep.subr.bf16.mxu0 0
        %1383 = vmatpush2.bf16.xpose.msra.mxu0 0
        %1384 = vmatprep.subr.bf16.mxu0 0
        %1385 = vmatpush2.bf16.xpose.msra.mxu0 0
        %1386 = vmatprep.subr.bf16.mxu0 0
        %1387 = vmatpush2.bf16.xpose.msra.mxu0 0
        %1388 = vmatprep.mubr.bf16.mxu0 0
        %1389 = vmatmul.mubr.bf16.gmra.mxu0 %v1351
        %v1390 = vpop.f32.mrf.mxu0
        %v1391 = vadd.f32 0.0, %v1390
        %v1392 = vpop.f32.mrf.mxu0
        %v1393 = vpop.f32.mrf.mxu0
        %v1394 = vpop.f32.mrf.mxu0
        %1395 = vdwg.mxu0
        %v1396 = vmul.f32 %v1391, 0.17677669
        %v1397 = vsel %vm1118, %v1396, -1e+30
        %v1398 = vsel %vm1171, %v1397, -inf
        %1399 = vmax.xlane.f32.xlu0 %v1398
        %v1400 = vpop.xlane.xlu0 %1399
        %v1401 = vsub.f32 %v1397, %v1400
        %v1402 = vmul.f32 %v1401, 1.442695
        %v1403 = vpow.pop %v1402
        %v1404 = vsel %vm1171, %v1403, 0.0
        %1405 = vadd.xlane.f32.xlu0 %v1404
        %v1406 = vpop.xlane.xlu0 %1405
        %v1407 = vrcp.pop %v1406
        %v1408 = vpack.c.bf16 %v1403, %v1403
        %1409 = vrot.lane.b32.xlu0 %v1121, 64
        %v1410 = vpop.permute.xlu0 %1409
        %v1412 = vsel %vm1171, %v1408, 0
        %v1415 = vsel %vm1186, %v1410, 0
        %1417 = vmatprep.subr.bf16.mxu0 0
        %1418 = vmatpush1.bf16.msra.mxu0 0
        %1419 = vmatprep.subr.bf16.mxu0 0
        %1420 = vmatpush1.bf16.msra.mxu0 0
        %1421 = vmatprep.subr.bf16.mxu0 0
        %1422 = vmatpush1.bf16.msra.mxu0 0
        %1423 = vmatprep.subr.bf16.mxu0 0
        %1424 = vmatpush1.bf16.msra.mxu0 0
        %1425 = vmatprep.subr.bf16.mxu0 0
        %1426 = vmatpush1.bf16.msra.mxu0 0
        %1427 = vmatprep.subr.bf16.mxu0 0
        %1428 = vmatpush1.bf16.msra.mxu0 0
        %1429 = vmatprep.subr.bf16.mxu0 0
        %1430 = vmatpush1.bf16.msra.mxu0 0
        %1431 = vmatprep.subr.bf16.mxu0 0
        %1432 = vmatpush1.bf16.msra.mxu0 %v1415
        %1433 = vmatprep.subr.bf16.mxu0 0
        %1434 = vmatpush2.bf16.msra.mxu0 0
        %1435 = vmatprep.subr.bf16.mxu0 0
        %1436 = vmatpush2.bf16.msra.mxu0 0
        %1437 = vmatprep.subr.bf16.mxu0 0
        %1438 = vmatpush2.bf16.msra.mxu0 0
        %1439 = vmatprep.subr.bf16.mxu0 0
        %1440 = vmatpush2.bf16.msra.mxu0 0
        %1441 = vmatprep.subr.bf16.mxu0 0
        %1442 = vmatpush2.bf16.msra.mxu0 0
        %1443 = vmatprep.subr.bf16.mxu0 0
        %1444 = vmatpush2.bf16.msra.mxu0 0
        %1445 = vmatprep.subr.bf16.mxu0 0
        %1446 = vmatpush2.bf16.msra.mxu0 0
        %1447 = vmatprep.subr.bf16.mxu0 0
        %1448 = vmatpush2.bf16.msra.mxu0 0
        %1449 = vmatprep.mubr.bf16.mxu0 0
        %1450 = vmatmul.mubr.bf16.gmra.mxu0 %v1412
        %v1451 = vpop.f32.mrf.mxu0
        %v1452 = vadd.f32 0.0, %v1451
        %v1453 = vpop.f32.mrf.mxu0
        %v1454 = vpop.f32.mrf.mxu0
        %v1455 = vpop.f32.mrf.mxu0
        %1456 = vdwg.mxu0
        %v1457 = vmul.f32 %v1452, %v1407
        %1458 = vrot.lane.b32.xlu0 %v1119, 32
        %v1459 = vpop.permute.xlu0 %1458
        %1460 = vrot.lane.b32.xlu0 %v1120, 32
        %v1461 = vpop.permute.xlu0 %1460
        %v1463 = vsel %vm1122, %v1459, 0
        %v1466 = vsel %vm1122, %v1461, 0
        %1468 = vmatprep.subr.bf16.mxu0 0
        %1469 = vmatpush1.bf16.xpose.msra.mxu0 0
        %1470 = vmatprep.subr.bf16.mxu0 0
        %1471 = vmatpush1.bf16.xpose.msra.mxu0 0
        %1472 = vmatprep.subr.bf16.mxu0 0
        %1473 = vmatpush1.bf16.xpose.msra.mxu0 0
        %1474 = vmatprep.subr.bf16.mxu0 0
        %1475 = vmatpush1.bf16.xpose.msra.mxu0 0
        %1476 = vmatprep.subr.bf16.mxu0 0
        %1477 = vmatpush1.bf16.xpose.msra.mxu0 0
        %1478 = vmatprep.subr.bf16.mxu0 0
        %1479 = vmatpush1.bf16.xpose.msra.mxu0 0
        %1480 = vmatprep.subr.bf16.mxu0 0
        %1481 = vmatpush1.bf16.xpose.msra.mxu0 0
        %1482 = vmatprep.subr.bf16.mxu0 0
        %1483 = vmatpush1.bf16.xpose.msra.mxu0 %v1466
        %1484 = vmatprep.subr.bf16.mxu0 0
        %1485 = vmatpush2.bf16.xpose.msra.mxu0 0
        %1486 = vmatprep.subr.bf16.mxu0 0
        %1487 = vmatpush2.bf16.xpose.msra.mxu0 0
        %1488 = vmatprep.subr.bf16.mxu0 0
        %1489 = vmatpush2.bf16.xpose.msra.mxu0 0
        %1490 = vmatprep.subr.bf16.mxu0 0
        %1491 = vmatpush2.bf16.xpose.msra.mxu0 0
        %1492 = vmatprep.subr.bf16.mxu0 0
        %1493 = vmatpush2.bf16.xpose.msra.mxu0 0
        %1494 = vmatprep.subr.bf16.mxu0 0
        %1495 = vmatpush2.bf16.xpose.msra.mxu0 0
        %1496 = vmatprep.subr.bf16.mxu0 0
        %1497 = vmatpush2.bf16.xpose.msra.mxu0 0
        %1498 = vmatprep.subr.bf16.mxu0 0
        %1499 = vmatpush2.bf16.xpose.msra.mxu0 0
        %1500 = vmatprep.mubr.bf16.mxu0 0
        %1501 = vmatmul.mubr.bf16.gmra.mxu0 %v1463
        %v1502 = vpop.f32.mrf.mxu0
        %v1503 = vadd.f32 0.0, %v1502
        %v1504 = vpop.f32.mrf.mxu0
        %v1505 = vpop.f32.mrf.mxu0
        %v1506 = vpop.f32.mrf.mxu0
        %1507 = vdwg.mxu0
        %v1508 = vmul.f32 %v1503, 0.17677669
        %v1509 = vsel %vm1118, %v1508, -1e+30
        %v1510 = vsel %vm1171, %v1509, -inf
        %1511 = vmax.xlane.f32.xlu0 %v1510
        %v1512 = vpop.xlane.xlu0 %1511
        %v1513 = vsub.f32 %v1509, %v1512
        %v1514 = vmul.f32 %v1513, 1.442695
        %v1515 = vpow.pop %v1514
        %v1516 = vsel %vm1171, %v1515, 0.0
        %1517 = vadd.xlane.f32.xlu0 %v1516
        %v1518 = vpop.xlane.xlu0 %1517
        %v1519 = vrcp.pop %v1518
        %v1520 = vpack.c.bf16 %v1515, %v1515
        %1521 = vrot.lane.b32.xlu0 %v1121, 32
        %v1522 = vpop.permute.xlu0 %1521
        %v1524 = vsel %vm1171, %v1520, 0
        %v1527 = vsel %vm1186, %v1522, 0
        %1529 = vmatprep.subr.bf16.mxu0 0
        %1530 = vmatpush1.bf16.msra.mxu0 0
        %1531 = vmatprep.subr.bf16.mxu0 0
        %1532 = vmatpush1.bf16.msra.mxu0 0
        %1533 = vmatprep.subr.bf16.mxu0 0
        %1534 = vmatpush1.bf16.msra.mxu0 0
        %1535 = vmatprep.subr.bf16.mxu0 0
        %1536 = vmatpush1.bf16.msra.mxu0 0
        %1537 = vmatprep.subr.bf16.mxu0 0
        %1538 = vmatpush1.bf16.msra.mxu0 0
        %1539 = vmatprep.subr.bf16.mxu0 0
        %1540 = vmatpush1.bf16.msra.mxu0 0
        %1541 = vmatprep.subr.bf16.mxu0 0
        %1542 = vmatpush1.bf16.msra.mxu0 0
        %1543 = vmatprep.subr.bf16.mxu0 0
        %1544 = vmatpush1.bf16.msra.mxu0 %v1527
        %1545 = vmatprep.subr.bf16.mxu0 0
        %1546 = vmatpush2.bf16.msra.mxu0 0
        %1547 = vmatprep.subr.bf16.mxu0 0
        %1548 = vmatpush2.bf16.msra.mxu0 0
        %1549 = vmatprep.subr.bf16.mxu0 0
        %1550 = vmatpush2.bf16.msra.mxu0 0
        %1551 = vmatprep.subr.bf16.mxu0 0
        %1552 = vmatpush2.bf16.msra.mxu0 0
        %1553 = vmatprep.subr.bf16.mxu0 0
        %1554 = vmatpush2.bf16.msra.mxu0 0
        %1555 = vmatprep.subr.bf16.mxu0 0
        %1556 = vmatpush2.bf16.msra.mxu0 0
        %1557 = vmatprep.subr.bf16.mxu0 0
        %1558 = vmatpush2.bf16.msra.mxu0 0
        %1559 = vmatprep.subr.bf16.mxu0 0
        %1560 = vmatpush2.bf16.msra.mxu0 0
        %1561 = vmatprep.mubr.bf16.mxu0 0
        %1562 = vmatmul.mubr.bf16.gmra.mxu0 %v1524
        %v1563 = vpop.f32.mrf.mxu0
        %v1564 = vadd.f32 0.0, %v1563
        %v1565 = vpop.f32.mrf.mxu0
        %v1566 = vpop.f32.mrf.mxu0
        %v1567 = vpop.f32.mrf.mxu0
        %1568 = vdwg.mxu0
        %v1569 = vmul.f32 %v1564, %v1519
        %1571 = vrot.lane.b32.xlu0 %v1345, 32
        %v1572 = vpop.permute.xlu0 %1571
        %1575 = vrot.lane.b32.xlu0 %v1457, 64
        %v1576 = vpop.permute.xlu0 %1575
        %1579 = vrot.lane.b32.xlu0 %v1569, 96
        %v1580 = vpop.permute.xlu0 %1579
        %v1582 = vsel %vm1122, %v1230, %v1572
        %vm1583 = vcmask 523264
        %v1584 = vsel %vm1583, %v1582, %v1576
        %vm1585 = vcmask 785408
        %v1586 = vsel %vm1585, %v1584, %v1580
        %v1587 = vpack.c.bf16 %v1586, %v1586
        %v1588 = vld [vmem:[%s593] sm:$0xf]
        %v1589 = vld [vmem:[%s593 + $0x4] sm:$0xf]
        %v1590 = vld [vmem:[%s593 + $0x8] sm:$0xf]
        %v1591 = vld [vmem:[%s593 + $0xc] sm:$0xf]
        %v1592 = vld [vmem:[%s593 + $0x10] sm:$0xf]
        %v1593 = vld [vmem:[%s593 + $0x14] sm:$0xf]
        %v1594 = vld [vmem:[%s593 + $0x18] sm:$0xf]
        %v1595 = vld [vmem:[%s593 + $0x1c] sm:$0xf]
        %v1596 = vld [vmem:[%s593 + $0x20] sm:$0xf]
        %v1597 = vld [vmem:[%s593 + $0x24] sm:$0xf]
        %v1598 = vld [vmem:[%s593 + $0x28] sm:$0xf]
        %v1599 = vld [vmem:[%s593 + $0x2c] sm:$0xf]
        %v1600 = vld [vmem:[%s593 + $0x30] sm:$0xf]
        %v1601 = vld [vmem:[%s593 + $0x34] sm:$0xf]
        %v1602 = vld [vmem:[%s593 + $0x38] sm:$0xf]
        %v1603 = vld [vmem:[%s593 + $0x3c] sm:$0xf]
        %v1620 = vunpack.c.l.b16 %v1588
        %v1621 = vunpack.c.l.b16 %v1589
        %v1622 = vunpack.c.l.b16 %v1590
        %v1623 = vunpack.c.l.b16 %v1591
        %v1624 = vunpack.c.l.b16 %v1592
        %v1625 = vunpack.c.l.b16 %v1593
        %v1626 = vunpack.c.l.b16 %v1594
        %v1627 = vunpack.c.l.b16 %v1595
        %v1628 = vunpack.c.l.b16 %v1596
        %v1629 = vunpack.c.l.b16 %v1597
        %v1630 = vunpack.c.l.b16 %v1598
        %v1631 = vunpack.c.l.b16 %v1599
        %v1632 = vunpack.c.l.b16 %v1600
        %v1633 = vunpack.c.l.b16 %v1601
        %v1634 = vunpack.c.l.b16 %v1602
        %v1635 = vunpack.c.l.b16 %v1603
        %v1636 = vpack.c.b16 %v1621, %v1620
        %v1637 = vpack.c.b16 %v1623, %v1622
        %v1638 = vpack.c.b16 %v1625, %v1624
        %v1639 = vpack.c.b16 %v1627, %v1626
        %v1640 = vpack.c.b16 %v1629, %v1628
        %v1641 = vpack.c.b16 %v1631, %v1630
        %v1642 = vpack.c.b16 %v1633, %v1632
        %v1643 = vpack.c.b16 %v1635, %v1634
        %1652 = vmatprep.subr.bf16.mxu0 0
        %1653 = vmatpush1.bf16.msra.mxu0 %v1643
        %1654 = vmatprep.subr.bf16.mxu0 0
        %1655 = vmatpush1.bf16.msra.mxu0 %v1642
        %1656 = vmatprep.subr.bf16.mxu0 0
        %1657 = vmatpush1.bf16.msra.mxu0 %v1641
        %1658 = vmatprep.subr.bf16.mxu0 0
        %1659 = vmatpush1.bf16.msra.mxu0 %v1640
        %1660 = vmatprep.subr.bf16.mxu0 0
        %1661 = vmatpush1.bf16.msra.mxu0 %v1639
        %1662 = vmatprep.subr.bf16.mxu0 0
        %1663 = vmatpush1.bf16.msra.mxu0 %v1638
        %1664 = vmatprep.subr.bf16.mxu0 0
        %1665 = vmatpush1.bf16.msra.mxu0 %v1637
        %1666 = vmatprep.subr.bf16.mxu0 0
        %1667 = vmatpush1.bf16.msra.mxu0 %v1636
        %1668 = vmatprep.subr.bf16.mxu0 0
        %1669 = vmatpush2.bf16.msra.mxu0 0
        %1670 = vmatprep.subr.bf16.mxu0 0
        %1671 = vmatpush2.bf16.msra.mxu0 0
        %1672 = vmatprep.subr.bf16.mxu0 0
        %1673 = vmatpush2.bf16.msra.mxu0 0
        %1674 = vmatprep.subr.bf16.mxu0 0
        %1675 = vmatpush2.bf16.msra.mxu0 0
        %1676 = vmatprep.subr.bf16.mxu0 0
        %1677 = vmatpush2.bf16.msra.mxu0 0
        %1678 = vmatprep.subr.bf16.mxu0 0
        %1679 = vmatpush2.bf16.msra.mxu0 0
        %1680 = vmatprep.subr.bf16.mxu0 0
        %1681 = vmatpush2.bf16.msra.mxu0 0
        %1682 = vmatprep.subr.bf16.mxu0 0
        %1683 = vmatpush2.bf16.msra.mxu0 0
        %1684 = vmatprep.mubr.bf16.mxu0 0
        %1685 = vmatmul.mubr.bf16.gmra.mxu0 %v1587
        %v1686 = vpop.f32.mrf.mxu0
        %v1687 = vadd.f32 0.0, %v1686
        %v1688 = vpop.f32.mrf.mxu0
        %v1689 = vpop.f32.mrf.mxu0
        %v1690 = vpop.f32.mrf.mxu0
        %1691 = vdwg.mxu0
        %v1692 = vadd.f32 %v699, %v1687
        %v1693 = vld [vmem:[%s691] sm:$0x1]
        %v1694 = vmul.f32 %v1692, %v1692
        %1695 = vadd.xlane.f32.xlu0 %v1694
        %v1696 = vpop.xlane.xlu0 %1695
        %v1697 = vmul.f32 %v1696, %v704
        %v1698 = vadd.f32 %v1697, 1e-06
        %v1699 = vrsqrt.pop %v1698
        %v1700 = vmul.f32 %v1692, %v1699
        %v1702 = vlaneseq
        %v1703 = vshrl.u32 %v1702, 7
        %v1704 = vsub.s32 0, %v1703
        %v1705 = vrot.slane %v1693, %v1704
        %v1707 = vmul.f32 %v1700, %v1705
        %v1708 = vpack.c.bf16 %v1707, %v1707
        %v1709 = vld [vmem:[%s602] sm:$0xff]
        %v1710 = vld [vmem:[%s602 + $0x8] sm:$0xff]
        %v1711 = vld [vmem:[%s602 + $0x10] sm:$0xff]
        %v1712 = vld [vmem:[%s602 + $0x18] sm:$0xff]
        %v1713 = vld [vmem:[%s602 + $0x20] sm:$0xff]
        %v1714 = vld [vmem:[%s602 + $0x28] sm:$0xff]
        %v1715 = vld [vmem:[%s602 + $0x30] sm:$0xff]
        %v1716 = vld [vmem:[%s602 + $0x38] sm:$0xff]
        %v1717 = vld [vmem:[%s602 + $0x40] sm:$0xff]
        %v1718 = vld [vmem:[%s602 + $0x48] sm:$0xff]
        %v1719 = vld [vmem:[%s602 + $0x50] sm:$0xff]
        %v1720 = vld [vmem:[%s602 + $0x58] sm:$0xff]
        %v1721 = vld [vmem:[%s602 + $0x60] sm:$0xff]
        %v1722 = vld [vmem:[%s602 + $0x68] sm:$0xff]
        %v1723 = vld [vmem:[%s602 + $0x70] sm:$0xff]
        %v1724 = vld [vmem:[%s602 + $0x78] sm:$0xff]
        %v1725 = vld [vmem:[%s602 + $0x80] sm:$0xff]
        %v1726 = vld [vmem:[%s602 + $0x88] sm:$0xff]
        %v1727 = vld [vmem:[%s602 + $0x90] sm:$0xff]
        %v1728 = vld [vmem:[%s602 + $0x98] sm:$0xff]
        %v1729 = vld [vmem:[%s602 + $0xa0] sm:$0xff]
        %v1730 = vld [vmem:[%s602 + $0xa8] sm:$0xff]
        %v1731 = vld [vmem:[%s602 + $0xb0] sm:$0xff]
        %v1732 = vld [vmem:[%s602 + $0xb8] sm:$0xff]
        %v1733 = vld [vmem:[%s602 + $0xc0] sm:$0xff]
        %v1734 = vld [vmem:[%s602 + $0xc8] sm:$0xff]
        %v1735 = vld [vmem:[%s602 + $0xd0] sm:$0xff]
        %v1736 = vld [vmem:[%s602 + $0xd8] sm:$0xff]
        %v1737 = vld [vmem:[%s602 + $0xe0] sm:$0xff]
        %v1738 = vld [vmem:[%s602 + $0xe8] sm:$0xff]
        %v1739 = vld [vmem:[%s602 + $0xf0] sm:$0xff]
        %v1740 = vld [vmem:[%s602 + $0xf8] sm:$0xff]
        %v1773 = vunpack.c.l.b16 %v1709
        %v1774 = vunpack.c.h.b16 %v1709
        %v1775 = vunpack.c.l.b16 %v1710
        %v1776 = vunpack.c.h.b16 %v1710
        %v1777 = vunpack.c.l.b16 %v1711
        %v1778 = vunpack.c.h.b16 %v1711
        %v1779 = vunpack.c.l.b16 %v1712
        %v1780 = vunpack.c.h.b16 %v1712
        %v1781 = vunpack.c.l.b16 %v1713
        %v1782 = vunpack.c.h.b16 %v1713
        %v1783 = vunpack.c.l.b16 %v1714
        %v1784 = vunpack.c.h.b16 %v1714
        %v1785 = vunpack.c.l.b16 %v1715
        %v1786 = vunpack.c.h.b16 %v1715
        %v1787 = vunpack.c.l.b16 %v1716
        %v1788 = vunpack.c.h.b16 %v1716
        %v1789 = vunpack.c.l.b16 %v1717
        %v1790 = vunpack.c.h.b16 %v1717
        %v1791 = vunpack.c.l.b16 %v1718
        %v1792 = vunpack.c.h.b16 %v1718
        %v1793 = vunpack.c.l.b16 %v1719
        %v1794 = vunpack.c.h.b16 %v1719
        %v1795 = vunpack.c.l.b16 %v1720
        %v1796 = vunpack.c.h.b16 %v1720
        %v1797 = vunpack.c.l.b16 %v1721
        %v1798 = vunpack.c.h.b16 %v1721
        %v1799 = vunpack.c.l.b16 %v1722
        %v1800 = vunpack.c.h.b16 %v1722
        %v1801 = vunpack.c.l.b16 %v1723
        %v1802 = vunpack.c.h.b16 %v1723
        %v1803 = vunpack.c.l.b16 %v1724
        %v1804 = vunpack.c.h.b16 %v1724
        %v1805 = vunpack.c.l.b16 %v1725
        %v1806 = vunpack.c.h.b16 %v1725
        %v1807 = vunpack.c.l.b16 %v1726
        %v1808 = vunpack.c.h.b16 %v1726
        %v1809 = vunpack.c.l.b16 %v1727
        %v1810 = vunpack.c.h.b16 %v1727
        %v1811 = vunpack.c.l.b16 %v1728
        %v1812 = vunpack.c.h.b16 %v1728
        %v1813 = vunpack.c.l.b16 %v1729
        %v1814 = vunpack.c.h.b16 %v1729
        %v1815 = vunpack.c.l.b16 %v1730
        %v1816 = vunpack.c.h.b16 %v1730
        %v1817 = vunpack.c.l.b16 %v1731
        %v1818 = vunpack.c.h.b16 %v1731
        %v1819 = vunpack.c.l.b16 %v1732
        %v1820 = vunpack.c.h.b16 %v1732
        %v1821 = vunpack.c.l.b16 %v1733
        %v1822 = vunpack.c.h.b16 %v1733
        %v1823 = vunpack.c.l.b16 %v1734
        %v1824 = vunpack.c.h.b16 %v1734
        %v1825 = vunpack.c.l.b16 %v1735
        %v1826 = vunpack.c.h.b16 %v1735
        %v1827 = vunpack.c.l.b16 %v1736
        %v1828 = vunpack.c.h.b16 %v1736
        %v1829 = vunpack.c.l.b16 %v1737
        %v1830 = vunpack.c.h.b16 %v1737
        %v1831 = vunpack.c.l.b16 %v1738
        %v1832 = vunpack.c.h.b16 %v1738
        %v1833 = vunpack.c.l.b16 %v1739
        %v1834 = vunpack.c.h.b16 %v1739
        %v1835 = vunpack.c.l.b16 %v1740
        %v1836 = vunpack.c.h.b16 %v1740
        %v1837 = vpack.c.b16 %v1777, %v1773
        %v1838 = vpack.c.b16 %v1778, %v1774
        %v1839 = vpack.c.b16 %v1779, %v1775
        %v1840 = vpack.c.b16 %v1780, %v1776
        %v1841 = vpack.c.b16 %v1785, %v1781
        %v1842 = vpack.c.b16 %v1786, %v1782
        %v1843 = vpack.c.b16 %v1787, %v1783
        %v1844 = vpack.c.b16 %v1788, %v1784
        %v1845 = vpack.c.b16 %v1793, %v1789
        %v1846 = vpack.c.b16 %v1794, %v1790
        %v1847 = vpack.c.b16 %v1795, %v1791
        %v1848 = vpack.c.b16 %v1796, %v1792
        %v1849 = vpack.c.b16 %v1801, %v1797
        %v1850 = vpack.c.b16 %v1802, %v1798
        %v1851 = vpack.c.b16 %v1803, %v1799
        %v1852 = vpack.c.b16 %v1804, %v1800
        %v1853 = vpack.c.b16 %v1809, %v1805
        %v1854 = vpack.c.b16 %v1810, %v1806
        %v1855 = vpack.c.b16 %v1811, %v1807
        %v1856 = vpack.c.b16 %v1812, %v1808
        %v1857 = vpack.c.b16 %v1817, %v1813
        %v1858 = vpack.c.b16 %v1818, %v1814
        %v1859 = vpack.c.b16 %v1819, %v1815
        %v1860 = vpack.c.b16 %v1820, %v1816
        %v1861 = vpack.c.b16 %v1825, %v1821
        %v1862 = vpack.c.b16 %v1826, %v1822
        %v1863 = vpack.c.b16 %v1827, %v1823
        %v1864 = vpack.c.b16 %v1828, %v1824
        %v1865 = vpack.c.b16 %v1833, %v1829
        %v1866 = vpack.c.b16 %v1834, %v1830
        %v1867 = vpack.c.b16 %v1835, %v1831
        %v1868 = vpack.c.b16 %v1836, %v1832
        %1901 = vmatprep.subr.bf16.mxu0 %v1866
        %1902 = vmatpush1.bf16.msra.mxu0 %v1865
        %1903 = vmatprep.subr.bf16.mxu0 %v1862
        %1904 = vmatpush1.bf16.msra.mxu0 %v1861
        %1905 = vmatprep.subr.bf16.mxu0 %v1858
        %1906 = vmatpush1.bf16.msra.mxu0 %v1857
        %1907 = vmatprep.subr.bf16.mxu0 %v1854
        %1908 = vmatpush1.bf16.msra.mxu0 %v1853
        %1909 = vmatprep.subr.bf16.mxu0 %v1850
        %1910 = vmatpush1.bf16.msra.mxu0 %v1849
        %1911 = vmatprep.subr.bf16.mxu0 %v1846
        %1912 = vmatpush1.bf16.msra.mxu0 %v1845
        %1913 = vmatprep.subr.bf16.mxu0 %v1842
        %1914 = vmatpush1.bf16.msra.mxu0 %v1841
        %1915 = vmatprep.subr.bf16.mxu0 %v1838
        %1916 = vmatpush1.bf16.msra.mxu0 %v1837
        %1917 = vmatprep.subr.bf16.mxu0 0
        %1918 = vmatpush2.bf16.msra.mxu0 0
        %1919 = vmatprep.subr.bf16.mxu0 0
        %1920 = vmatpush2.bf16.msra.mxu0 0
        %1921 = vmatprep.subr.bf16.mxu0 0
        %1922 = vmatpush2.bf16.msra.mxu0 0
        %1923 = vmatprep.subr.bf16.mxu0 0
        %1924 = vmatpush2.bf16.msra.mxu0 0
        %1925 = vmatprep.subr.bf16.mxu0 0
        %1926 = vmatpush2.bf16.msra.mxu0 0
        %1927 = vmatprep.subr.bf16.mxu0 0
        %1928 = vmatpush2.bf16.msra.mxu0 0
        %1929 = vmatprep.subr.bf16.mxu0 0
        %1930 = vmatpush2.bf16.msra.mxu0 0
        %1931 = vmatprep.subr.bf16.mxu0 0
        %1932 = vmatpush2.bf16.msra.mxu0 0
        %1933 = vmatprep.mubr.bf16.mxu0 0
        %1934 = vmatmul.mubr.bf16.gmra.mxu0 %v1708
        %v1935 = vpop.f32.mrf.mxu0
        %v1936 = vadd.f32 0.0, %v1935
        %v1937 = vpop.f32.mrf.mxu0
        %v1938 = vadd.f32 0.0, %v1937
        %v1939 = vpop.f32.mrf.mxu0
        %v1940 = vpop.f32.mrf.mxu0
        %1941 = vdwg.mxu0
        %1942 = vmatprep.subr.bf16.mxu0 %v1868
        %1943 = vmatpush1.bf16.msra.mxu0 %v1867
        %1944 = vmatprep.subr.bf16.mxu0 %v1864
        %1945 = vmatpush1.bf16.msra.mxu0 %v1863
        %1946 = vmatprep.subr.bf16.mxu0 %v1860
        %1947 = vmatpush1.bf16.msra.mxu0 %v1859
        %1948 = vmatprep.subr.bf16.mxu0 %v1856
        %1949 = vmatpush1.bf16.msra.mxu0 %v1855
        %1950 = vmatprep.subr.bf16.mxu0 %v1852
        %1951 = vmatpush1.bf16.msra.mxu0 %v1851
        %1952 = vmatprep.subr.bf16.mxu0 %v1848
        %1953 = vmatpush1.bf16.msra.mxu0 %v1847
        %1954 = vmatprep.subr.bf16.mxu0 %v1844
        %1955 = vmatpush1.bf16.msra.mxu0 %v1843
        %1956 = vmatprep.subr.bf16.mxu0 %v1840
        %1957 = vmatpush1.bf16.msra.mxu0 %v1839
        %1958 = vmatprep.subr.bf16.mxu0 0
        %1959 = vmatpush2.bf16.msra.mxu0 0
        %1960 = vmatprep.subr.bf16.mxu0 0
        %1961 = vmatpush2.bf16.msra.mxu0 0
        %1962 = vmatprep.subr.bf16.mxu0 0
        %1963 = vmatpush2.bf16.msra.mxu0 0
        %1964 = vmatprep.subr.bf16.mxu0 0
        %1965 = vmatpush2.bf16.msra.mxu0 0
        %1966 = vmatprep.subr.bf16.mxu0 0
        %1967 = vmatpush2.bf16.msra.mxu0 0
        %1968 = vmatprep.subr.bf16.mxu0 0
        %1969 = vmatpush2.bf16.msra.mxu0 0
        %1970 = vmatprep.subr.bf16.mxu0 0
        %1971 = vmatpush2.bf16.msra.mxu0 0
        %1972 = vmatprep.subr.bf16.mxu0 0
        %1973 = vmatpush2.bf16.msra.mxu0 0
        %1974 = vmatprep.mubr.bf16.mxu0 0
        %1975 = vmatmul.mubr.bf16.gmra.mxu0 %v1708
        %v1976 = vpop.f32.mrf.mxu0
        %v1977 = vadd.f32 0.0, %v1976
        %v1978 = vpop.f32.mrf.mxu0
        %v1979 = vadd.f32 0.0, %v1978
        %v1980 = vpop.f32.mrf.mxu0
        %v1981 = vpop.f32.mrf.mxu0
        %1982 = vdwg.mxu0
        %v1983 = vxor.u32 %v1936, 2147483648
        %v1984 = vxor.u32 %v1938, 2147483648
        %v1985 = vmul.f32 %v1983, 1.442695
        %v1986 = vpow.pop %v1985
        %v1987 = vmul.f32 %v1984, 1.442695
        %v1988 = vpow.pop %v1987
        %v1989 = vadd.f32 %v1986, 1.0
        %v1990 = vadd.f32 %v1988, 1.0
        %v1991 = vrcp.pop %v1989
        %v1992 = vmul.f32 1.0, %v1991
        %v1993 = vrcp.pop %v1990
        %v1994 = vmul.f32 1.0, %v1993
        %v1995 = vmul.f32 %v1936, %v1992
        %v1996 = vmul.f32 %v1938, %v1994
        %v1997 = vmul.f32 %v1995, %v1977
        %v1998 = vmul.f32 %v1996, %v1979
        %v1999 = vpack.c.bf16 %v1997, %v1997
        %v2000 = vpack.c.bf16 %v1998, %v1998
        %v2001 = vld [vmem:[%s611] sm:$0xf]
        %v2002 = vld [vmem:[%s611 + $0x4] sm:$0xf]
        %v2003 = vld [vmem:[%s611 + $0x8] sm:$0xf]
        %v2004 = vld [vmem:[%s611 + $0xc] sm:$0xf]
        %v2005 = vld [vmem:[%s611 + $0x10] sm:$0xf]
        %v2006 = vld [vmem:[%s611 + $0x14] sm:$0xf]
        %v2007 = vld [vmem:[%s611 + $0x18] sm:$0xf]
        %v2008 = vld [vmem:[%s611 + $0x1c] sm:$0xf]
        %v2009 = vld [vmem:[%s611 + $0x20] sm:$0xf]
        %v2010 = vld [vmem:[%s611 + $0x24] sm:$0xf]
        %v2011 = vld [vmem:[%s611 + $0x28] sm:$0xf]
        %v2012 = vld [vmem:[%s611 + $0x2c] sm:$0xf]
        %v2013 = vld [vmem:[%s611 + $0x30] sm:$0xf]
        %v2014 = vld [vmem:[%s611 + $0x34] sm:$0xf]
        %v2015 = vld [vmem:[%s611 + $0x38] sm:$0xf]
        %v2016 = vld [vmem:[%s611 + $0x3c] sm:$0xf]
        %v2017 = vld [vmem:[%s611 + $0x40] sm:$0xf]
        %v2018 = vld [vmem:[%s611 + $0x44] sm:$0xf]
        %v2019 = vld [vmem:[%s611 + $0x48] sm:$0xf]
        %v2020 = vld [vmem:[%s611 + $0x4c] sm:$0xf]
        %v2021 = vld [vmem:[%s611 + $0x50] sm:$0xf]
        %v2022 = vld [vmem:[%s611 + $0x54] sm:$0xf]
        %v2023 = vld [vmem:[%s611 + $0x58] sm:$0xf]
        %v2024 = vld [vmem:[%s611 + $0x5c] sm:$0xf]
        %v2025 = vld [vmem:[%s611 + $0x60] sm:$0xf]
        %v2026 = vld [vmem:[%s611 + $0x64] sm:$0xf]
        %v2027 = vld [vmem:[%s611 + $0x68] sm:$0xf]
        %v2028 = vld [vmem:[%s611 + $0x6c] sm:$0xf]
        %v2029 = vld [vmem:[%s611 + $0x70] sm:$0xf]
        %v2030 = vld [vmem:[%s611 + $0x74] sm:$0xf]
        %v2031 = vld [vmem:[%s611 + $0x78] sm:$0xf]
        %v2032 = vld [vmem:[%s611 + $0x7c] sm:$0xf]
        %v2065 = vunpack.c.l.b16 %v2001
        %v2066 = vunpack.c.l.b16 %v2002
        %v2067 = vunpack.c.l.b16 %v2003
        %v2068 = vunpack.c.l.b16 %v2004
        %v2069 = vunpack.c.l.b16 %v2005
        %v2070 = vunpack.c.l.b16 %v2006
        %v2071 = vunpack.c.l.b16 %v2007
        %v2072 = vunpack.c.l.b16 %v2008
        %v2073 = vunpack.c.l.b16 %v2009
        %v2074 = vunpack.c.l.b16 %v2010
        %v2075 = vunpack.c.l.b16 %v2011
        %v2076 = vunpack.c.l.b16 %v2012
        %v2077 = vunpack.c.l.b16 %v2013
        %v2078 = vunpack.c.l.b16 %v2014
        %v2079 = vunpack.c.l.b16 %v2015
        %v2080 = vunpack.c.l.b16 %v2016
        %v2081 = vunpack.c.l.b16 %v2017
        %v2082 = vunpack.c.l.b16 %v2018
        %v2083 = vunpack.c.l.b16 %v2019
        %v2084 = vunpack.c.l.b16 %v2020
        %v2085 = vunpack.c.l.b16 %v2021
        %v2086 = vunpack.c.l.b16 %v2022
        %v2087 = vunpack.c.l.b16 %v2023
        %v2088 = vunpack.c.l.b16 %v2024
        %v2089 = vunpack.c.l.b16 %v2025
        %v2090 = vunpack.c.l.b16 %v2026
        %v2091 = vunpack.c.l.b16 %v2027
        %v2092 = vunpack.c.l.b16 %v2028
        %v2093 = vunpack.c.l.b16 %v2029
        %v2094 = vunpack.c.l.b16 %v2030
        %v2095 = vunpack.c.l.b16 %v2031
        %v2096 = vunpack.c.l.b16 %v2032
        %v2097 = vpack.c.b16 %v2066, %v2065
        %v2098 = vpack.c.b16 %v2068, %v2067
        %v2099 = vpack.c.b16 %v2070, %v2069
        %v2100 = vpack.c.b16 %v2072, %v2071
        %v2101 = vpack.c.b16 %v2074, %v2073
        %v2102 = vpack.c.b16 %v2076, %v2075
        %v2103 = vpack.c.b16 %v2078, %v2077
        %v2104 = vpack.c.b16 %v2080, %v2079
        %v2105 = vpack.c.b16 %v2082, %v2081
        %v2106 = vpack.c.b16 %v2084, %v2083
        %v2107 = vpack.c.b16 %v2086, %v2085
        %v2108 = vpack.c.b16 %v2088, %v2087
        %v2109 = vpack.c.b16 %v2090, %v2089
        %v2110 = vpack.c.b16 %v2092, %v2091
        %v2111 = vpack.c.b16 %v2094, %v2093
        %v2112 = vpack.c.b16 %v2096, %v2095
        %2129 = vmatprep.subr.bf16.mxu0 0
        %2130 = vmatpush1.bf16.msra.mxu0 %v2104
        %2131 = vmatprep.subr.bf16.mxu0 0
        %2132 = vmatpush1.bf16.msra.mxu0 %v2103
        %2133 = vmatprep.subr.bf16.mxu0 0
        %2134 = vmatpush1.bf16.msra.mxu0 %v2102
        %2135 = vmatprep.subr.bf16.mxu0 0
        %2136 = vmatpush1.bf16.msra.mxu0 %v2101
        %2137 = vmatprep.subr.bf16.mxu0 0
        %2138 = vmatpush1.bf16.msra.mxu0 %v2100
        %2139 = vmatprep.subr.bf16.mxu0 0
        %2140 = vmatpush1.bf16.msra.mxu0 %v2099
        %2141 = vmatprep.subr.bf16.mxu0 0
        %2142 = vmatpush1.bf16.msra.mxu0 %v2098
        %2143 = vmatprep.subr.bf16.mxu0 0
        %2144 = vmatpush1.bf16.msra.mxu0 %v2097
        %2145 = vmatprep.subr.bf16.mxu0 0
        %2146 = vmatpush2.bf16.msra.mxu0 %v2112
        %2147 = vmatprep.subr.bf16.mxu0 0
        %2148 = vmatpush2.bf16.msra.mxu0 %v2111
        %2149 = vmatprep.subr.bf16.mxu0 0
        %2150 = vmatpush2.bf16.msra.mxu0 %v2110
        %2151 = vmatprep.subr.bf16.mxu0 0
        %2152 = vmatpush2.bf16.msra.mxu0 %v2109
        %2153 = vmatprep.subr.bf16.mxu0 0
        %2154 = vmatpush2.bf16.msra.mxu0 %v2108
        %2155 = vmatprep.subr.bf16.mxu0 0
        %2156 = vmatpush2.bf16.msra.mxu0 %v2107
        %2157 = vmatprep.subr.bf16.mxu0 0
        %2158 = vmatpush2.bf16.msra.mxu0 %v2106
        %2159 = vmatprep.subr.bf16.mxu0 0
        %2160 = vmatpush2.bf16.msra.mxu0 %v2105
        %2161 = vmatprep.mubr.bf16.mxu0 %v2000
        %2162 = vmatmul.mubr.bf16.gmra.mxu0 %v1999
        %v2163 = vpop.f32.mrf.mxu0
        %v2164 = vadd.f32 0.0, %v2163
        %v2165 = vpop.f32.mrf.mxu0
        %v2166 = vpop.f32.mrf.mxu0
        %v2167 = vpop.f32.mrf.mxu0
        %2168 = vdwg.mxu0
        %v2169 = vadd.f32 %v1692, %v2164
        %2170 = vst [vmem:[#allocation2] sm:$0xff] %v2169
        %2171 = vst [vmem:[%s674] sm:$0xff] %v2169
        %s2172 = sand.u32 %s308, 1
        %s2173 = scalar_lea.sflag [#allocation5], %s2172
        %s2174 = sand.u32 %s308, 1
        %s2175 = smul.addr %s2174, 8
        %s2176 = scalar_lea.vmem [#allocation17], %s2175
        %s2177 = sand.u32 %s43, 1
        %s2178 = scalar_lea.sflag [#allocation19], %s2177
        %s2179 = sand.u32 %s336, 1
        %s2180 = smul.addr %s2179, 8
        %s2181 = scalar_lea.vmem [#allocation18], %s2180
        %s2182 = sand.u32 %s43, 1
        %s2183 = scalar_lea.sflag [#allocation19], %s2182
        %s2184 = sand.u32 %s364, 1
        %s2185 = smul.addr %s2184, 8
        %s2186 = scalar_lea.vmem [#allocation20], %s2185
        // Predicated region
        $region97: #{tpu_custom_call.1} parent=59 // pred_check
          %p2187 = pneg %p318
        $region98: #{tpu_custom_call.1} parent=59 // pred_check_branch
          %2189 = sbr.rel (%p2187) target = $region100
        $region99: #{tpu_custom_call.1} parent=59 // pred_region
          %s2191 = ssub.s32 128, 128
          %2192 = vsyncadd %s2173, %s2191
          %s2193 = smul.addr %s47, 128
          %s2194 = scalar_lea.hbm %s10, %s2193
          %s2196 = sshll.u32 %s2176, 4
          %s2197 = int_to_ptr.vmem [resolvable:$true] %s2196
          %2199 = dma.vmem_to_hbm [thread:$0]  %s2197, 128, %s2194, %s2173
        $region100: #{tpu_custom_call.1} parent=59 // pred_fallthru
          _
        // Predicated region
        $region101: #{tpu_custom_call.1} parent=59 // pred_check
          %p2200 = pneg %p346
        $region102: #{tpu_custom_call.1} parent=59 // pred_check_branch
          %2202 = sbr.rel (%p2200) target = $region104
        $region103: #{tpu_custom_call.1} parent=59 // pred_region
          %s2204 = ssub.s32 128, 128
          %2205 = vsyncadd %s2178, %s2204
          %s2206 = smul.addr %s48, 2
          %s2207 = sadd.s32 %s47, %s2206
          %s2208 = smul.addr %s2207, 128
          %s2209 = scalar_lea.hbm %s11, %s2208
          %s2211 = sshll.u32 %s2181, 4
          %s2212 = int_to_ptr.vmem [resolvable:$true] %s2211
          %2214 = dma.vmem_to_hbm [thread:$0]  %s2212, 128, %s2209, %s2178
        $region104: #{tpu_custom_call.1} parent=59 // pred_fallthru
          _
        // Predicated region
        $region105: #{tpu_custom_call.1} parent=59 // pred_check
          %p2215 = pneg %p374
        $region106: #{tpu_custom_call.1} parent=59 // pred_check_branch
          %2217 = sbr.rel (%p2215) target = $region108
        $region107: #{tpu_custom_call.1} parent=59 // pred_region
          %s2219 = ssub.s32 128, 128
          %2220 = vsyncadd %s2183, %s2219
          %s2221 = smul.addr %s48, 2
          %s2222 = sadd.s32 %s47, %s2221
          %s2223 = smul.addr %s2222, 128
          %s2224 = scalar_lea.hbm %s12, %s2223
          %s2226 = sshll.u32 %s2186, 4
          %s2227 = int_to_ptr.vmem [resolvable:$true] %s2226
          %2229 = dma.vmem_to_hbm [thread:$0]  %s2227, 128, %s2224, %s2183
        $region108: #{tpu_custom_call.1} parent=59 // pred_fallthru
          _
      $region60: #{tpu_custom_call.1} parent=5 // pred_fallthru
        _
      %p2230 = scmp.le.s32.totalorder 2, %s38
      // Predicated region
      $region109: #{tpu_custom_call.1} parent=5 // pred_check
        %p2231 = pneg %p2230
      $region110: #{tpu_custom_call.1} parent=5 // pred_check_branch
        %2233 = sbr.rel (%p2231) target = $region112
      $region111: #{tpu_custom_call.1} parent=5 // pred_region
        %s2234 = ssub.s32 %s38, 2
        // Predicated region
        $region113: #{tpu_custom_call.1} parent=111 // pred_check
          %p2235 = pneg %p324
        $region114: #{tpu_custom_call.1} parent=111 // pred_check_branch
          %2237 = sbr.rel (%p2235) target = $region116
        $region115: #{tpu_custom_call.1} parent=111 // pred_region
          %s2238 = sand.u32 %s309, 1
          %s2239 = scalar_lea.sflag [#allocation5], %s2238
          %s2240 = sand.u32 %s309, 1
          %s2241 = smul.addr %s2240, 8
          %s2242 = scalar_lea.vmem [#allocation17], %s2241
          %2243 = dma.done %s2239, 128
        $region116: #{tpu_custom_call.1} parent=111 // pred_fallthru
          _
        // Predicated region
        $region117: #{tpu_custom_call.1} parent=111 // pred_check
          %p2244 = pneg %p352
        $region118: #{tpu_custom_call.1} parent=111 // pred_check_branch
          %2246 = sbr.rel (%p2244) target = $region120
        $region119: #{tpu_custom_call.1} parent=111 // pred_region
          %s2247 = sand.u32 %s44, 1
          %s2248 = scalar_lea.sflag [#allocation19], %s2247
          %s2249 = sand.u32 %s337, 1
          %s2250 = smul.addr %s2249, 8
          %s2251 = scalar_lea.vmem [#allocation18], %s2250
          %2252 = dma.done %s2248, 128
        $region120: #{tpu_custom_call.1} parent=111 // pred_fallthru
          _
        // Predicated region
        $region121: #{tpu_custom_call.1} parent=111 // pred_check
          %p2253 = pneg %p380
        $region122: #{tpu_custom_call.1} parent=111 // pred_check_branch
          %2255 = sbr.rel (%p2253) target = $region124
        $region123: #{tpu_custom_call.1} parent=111 // pred_region
          %s2256 = sand.u32 %s44, 1
          %s2257 = scalar_lea.sflag [#allocation19], %s2256
          %s2258 = sand.u32 %s365, 1
          %s2259 = smul.addr %s2258, 8
          %s2260 = scalar_lea.vmem [#allocation20], %s2259
          %2261 = dma.done %s2257, 128
        $region124: #{tpu_custom_call.1} parent=111 // pred_fallthru
          _
      $region112: #{tpu_custom_call.1} parent=5 // pred_fallthru
        _
    $region6: #{tpu_custom_call.1} parent=1 // loop_footer
      %s42 = sadd.s32 1, %s38
    $region7: #{tpu_custom_call.1} parent=1 // loop_footer_branch
      %37 = sbr.rel target = $region3
    $region8: #{tpu_custom_call.1} parent=1 // loop_exit
      _
    %2262 = vsyncpa [#allocation4], 1
    %s2263 = scalar_lea.sflag [#allocation4], 1
    %2264 = vsyncpa %s2263, 1
    %2265 = vsyncpa [#allocation7], 1
    %s2266 = scalar_lea.sflag [#allocation7], 1
    %2267 = vsyncpa %s2266, 1
    %2268 = vsyncpa [#allocation10], 1
    %2269 = vsyncpa [#allocation13], 1
    %s2270 = scalar_lea.sflag [#allocation13], 1
    %2271 = vsyncpa %s2270, 1
    %2272 = vsyncpa [#allocation16], 1
    %s2273 = scalar_lea.sflag [#allocation16], 1
    %2274 = vsyncpa %s2273, 1
    %2275 = vsyncpa [#allocation5], 1
    %s2276 = scalar_lea.sflag [#allocation5], 1
    %2277 = vsyncpa %s2276, 1
    %2278 = vsyncpa [#allocation19], 1
    %s2279 = scalar_lea.sflag [#allocation19], 1
    %2280 = vsyncpa %s2279, 1

</llo_original>
